<compile_context>
chip_gen: v5e
topology: v5e:2x2
jax: 0.10.0
libtpu: 0.0.40
codegen_flags: <defaults>
</compile_context>

<pallas_src>
import jax
import jax.numpy as jnp
from jax import lax
from jax.experimental import pallas as pl
from jax.experimental.pallas import tpu as pltpu


def lstm_kernel(x_ref, wih_t_ref, whh_t_ref, b_ref, wout_t_ref, bout_ref,
                h0_ref, c0_ref, out_ref, hs_ref):
    T = x_ref.shape[0]
    HP = h0_ref.shape[1]            # padded hidden width (multiple of 128)

    x = x_ref[...].astype(jnp.bfloat16)      # (T, D)
    wih_t = wih_t_ref[...]                   # (D, 4*HP)   bf16
    whh_t = whh_t_ref[...]                   # (HP, 4*HP)  bf16
    b = b_ref[...]                           # (1, 4*HP)   f32

    # Input contribution to the gates for every timestep: ONE MXU pass, kept in
    # vregs (only ~T*4*HP f32 values) — no VMEM scratch round-trip.
    gx = jnp.dot(x, wih_t, preferred_element_type=jnp.float32) + b   # (T, 4*HP) f32

    # Padded lanes of h0/c0 are zero (wrapper guarantees it); with zero padded
    # weight columns the padded gate lanes are exactly 0, so h/c pads stay 0.
    h = h0_ref[...]                 # (1, HP) f32
    c = c0_ref[...]                 # (1, HP) f32

    # Statically unrolled recurrence: only the (h, c) update lives on the serial path.
    for t in range(T):
        gates = gx[t:t + 1, :] + jnp.dot(h.astype(jnp.bfloat16), whh_t,
                                         preferred_element_type=jnp.float32)
        # Gate layout (reordered in the wrapper): [i, f, o, g] — the three sigmoid
        # gates are one contiguous 3*HP-lane EUP issue, tanh gate is the last block.
        sig = jax.nn.sigmoid(gates[:, 0:3 * HP])
        i_g = sig[:, 0 * HP:1 * HP]
        f_g = sig[:, 1 * HP:2 * HP]
        o_g = sig[:, 2 * HP:3 * HP]
        g_g = jnp.tanh(gates[:, 3 * HP:4 * HP])
        c = f_g * c + i_g * g_g
        h = o_g * jnp.tanh(c)
        hs_ref[pl.ds(t, 1), :] = h          # off the serial dep path; overlaps

    # Hoisted output projection + batched log-softmax; one dense (T, A) store.
    hs = hs_ref[...].astype(jnp.bfloat16)                              # (T, HP)
    logits = jnp.dot(hs, wout_t_ref[...],
                     preferred_element_type=jnp.float32) + bout_ref[...]
    m = jnp.max(logits, axis=-1, keepdims=True)
    lse = m + jnp.log(jnp.sum(jnp.exp(logits - m), axis=-1, keepdims=True))
    out_ref[...] = (logits - lse).astype(out_ref.dtype)


def prepare_lstm_params(wih, whh, bih, bhh, wout, bout):
    """One-time weight prep: gate reorder [i,f,g,o]->[i,f,o,g], lane-pad each gate
    block to HP=ceil(H/128)*128, transpose for right-multiplication, cast to bf16."""
    D = wih.shape[1]
    H = whh.shape[1]
    A = wout.shape[0]
    HP = ((H + 127) // 128) * 128

    perm = jnp.array([0, 1, 3, 2])                     # i, f, o, g
    wih_t = wih.T.reshape(D, 4, H)[:, perm, :]         # (D, 4, H)
    whh_t = whh.T.reshape(H, 4, H)[:, perm, :]         # (H, 4, H)
    b = (bih + bhh).reshape(4, H)[perm, :]             # (4, H)

    wih_t_pad = (jnp.zeros((D, 4, HP), jnp.float32)
                 .at[:, :, :H].set(wih_t).reshape(D, 4 * HP)).astype(jnp.bfloat16)
    whh_t_pad = (jnp.zeros((HP, 4, HP), jnp.float32)
                 .at[:H, :, :H].set(whh_t).reshape(HP, 4 * HP)).astype(jnp.bfloat16)
    b_pad = (jnp.zeros((1, 4, HP), jnp.float32)
             .at[0, :, :H].set(b).reshape(1, 4 * HP))
    wout_t_pad = (jnp.zeros((HP, A), jnp.float32)
                  .at[:H, :].set(wout.T)).astype(jnp.bfloat16)
    bout2 = bout.reshape(1, A).astype(jnp.float32)

    return dict(wih_t=wih_t_pad, whh_t=whh_t_pad, b=b_pad,
                wout_t=wout_t_pad, bout=bout2, H=H, HP=HP, A=A)


def lstm_forward(x, params, h0, c0):
    """x: (T, input_dim). Returns log-probs of shape (T, alphabet_size)."""
    T, D = x.shape
    H, HP, A = params["H"], params["HP"], params["A"]

    # Zero-pad the (possibly externally supplied) initial states; the padded-lane
    # invariant of the kernel depends on these pads being exactly zero.
    h0p = jnp.zeros((1, HP), jnp.float32).at[:, :H].set(h0)
    c0p = jnp.zeros((1, HP), jnp.float32).at[:, :H].set(c0)

    vmem = pl.BlockSpec(memory_space=pltpu.MemorySpace.VMEM)
    return pl.pallas_call(
        lstm_kernel,
        out_shape=jax.ShapeDtypeStruct((T, A), jnp.float32),
        in_specs=[vmem] * 8,
        out_specs=vmem,
        scratch_shapes=[
            pltpu.VMEM((T, HP), jnp.float32),       # h_t for all timesteps
        ],
    )(x, params["wih_t"], params["whh_t"], params["b"],
      params["wout_t"], params["bout"], h0p, c0p)


def ref_forward(x, wih, whh, bih, bhh, wout, bout, h0, c0):
    """Pure-JAX f32 reference replicating nn.LSTM + Linear + log_softmax."""
    H = whh.shape[1]

    def step(carry, xt):
        h, c = carry
        gates = xt @ wih.T + bih + h @ whh.T + bhh
        i_g = jax.nn.sigmoid(gates[0 * H:1 * H])
        f_g = jax.nn.sigmoid(gates[1 * H:2 * H])
        g_g = jnp.tanh(gates[2 * H:3 * H])
        o_g = jax.nn.sigmoid(gates[3 * H:4 * H])
        c_new = f_g * c + i_g * g_g
        h_new = o_g * jnp.tanh(c_new)
        return (h_new, c_new), h_new

    (_, _), hs = lax.scan(step, (h0[0], c0[0]), x)
    logits = hs @ wout.T + bout
    return jax.nn.log_softmax(logits, axis=1)


if __name__ == "__main__":
    # Small shapes consistent with the module's forward pass (batch=1 folded away).
    T = 8              # sequence length
    D = 16             # input_dim
    H = 32             # hidden_dim
    A = 256            # alphabet_size

    key = jax.random.PRNGKey(0)
    ks = jax.random.split(key, 8)

    # Deterministic parameter init (PyTorch-style uniform ranges).
    k_lstm = 1.0 / jnp.sqrt(H)
    wih = jax.random.uniform(ks[0], (4 * H, D), jnp.float32, -k_lstm, k_lstm)
    whh = jax.random.uniform(ks[1], (4 * H, H), jnp.float32, -k_lstm, k_lstm)
    bih = jax.random.uniform(ks[2], (4 * H,), jnp.float32, -k_lstm, k_lstm)
    bhh = jax.random.uniform(ks[3], (4 * H,), jnp.float32, -k_lstm, k_lstm)
    k_lin = 1.0 / jnp.sqrt(H)
    wout = jax.random.uniform(ks[4], (A, H), jnp.float32, -k_lin, k_lin)
    bout = jax.random.uniform(ks[5], (A,), jnp.float32, -k_lin, k_lin)

    # Input sequence: PyTorch shape (T, 1, D); squeeze batch=1 for the kernel.
    sequence = jax.random.normal(ks[6], (T, 1, D), jnp.float32)
    x = sequence.reshape(T, D)

    # init_hidden(): zeros (1, 1, H) -> (1, H)
    h0 = jnp.zeros((1, H), jnp.float32)
    c0 = jnp.zeros((1, H), jnp.float32)

    # Weights are prepared ONCE (inference-time constants), outside the call path.
    params = prepare_lstm_params(wih, whh, bih, bhh, wout, bout)

    out = lstm_forward(x, params, h0, c0)
    out = jax.block_until_ready(out)

    ref = ref_forward(x, wih, whh, bih, bhh, wout, bout, h0, c0)
    assert out.shape == (T, A)
    # bf16 MXU operands (f32 accumulate) vs. the f32 reference: tolerance is
    # loosened accordingly (log-probs agree to ~1e-2 at these shapes).
    assert jnp.allclose(out, ref, atol=5e-2, rtol=5e-2), "mismatch vs reference"

    print("KERNEL_OK")
</pallas_src>

<mosaic_0001>
module attributes {stable_mosaic.version = 11 : i64} {
  func.func @lstm_kernel(%arg0: memref<8x16xf32, #tpu.memory_space<vmem>>, %arg1: memref<16x512xbf16, #tpu.memory_space<vmem>>, %arg2: memref<128x512xbf16, #tpu.memory_space<vmem>>, %arg3: memref<1x512xf32, #tpu.memory_space<vmem>>, %arg4: memref<128x256xbf16, #tpu.memory_space<vmem>>, %arg5: memref<1x256xf32, #tpu.memory_space<vmem>>, %arg6: memref<1x128xf32, #tpu.memory_space<vmem>>, %arg7: memref<1x128xf32, #tpu.memory_space<vmem>>, %arg8: memref<8x256xf32, #tpu.memory_space<vmem>>, %arg9: memref<8x128xf32, #tpu.memory_space<vmem>>) attributes {dimension_semantics = [], scalar_prefetch = 0 : i64, scratch_operands = 1 : i64, tpu.core_type = #tpu.core_type<tc>} {
    %c0 = arith.constant 0 : index
    %c0_0 = arith.constant 0 : index
    %0 = vector.load %arg0[%c0, %c0_0] : memref<8x16xf32, #tpu.memory_space<vmem>>, vector<8x16xf32>
    %1 = arith.truncf %0 : vector<8x16xf32> to vector<8x16xbf16>
    %c0_1 = arith.constant 0 : index
    %c0_2 = arith.constant 0 : index
    %2 = vector.load %arg1[%c0_1, %c0_2] : memref<16x512xbf16, #tpu.memory_space<vmem>>, vector<16x512xbf16>
    %c0_3 = arith.constant 0 : index
    %c0_4 = arith.constant 0 : index
    %3 = vector.load %arg2[%c0_3, %c0_4] : memref<128x512xbf16, #tpu.memory_space<vmem>>, vector<128x512xbf16>
    %c0_5 = arith.constant 0 : index
    %c0_6 = arith.constant 0 : index
    %4 = vector.load %arg3[%c0_5, %c0_6] : memref<1x512xf32, #tpu.memory_space<vmem>>, vector<1x512xf32>
    %cst = arith.constant dense<0.000000e+00> : vector<8x512xf32>
    %5 = tpu.matmul %1, %2, %cst {dimension_numbers = #tpu.dot_dimension_numbers<[1], [0], [0], [1], [0, 0, 1, 1], [], []>} : vector<8x16xbf16>, vector<16x512xbf16>, vector<8x512xf32> -> vector<8x512xf32>
    %6 = vector.broadcast %4 : vector<1x512xf32> to vector<8x512xf32>
    %7 = arith.addf %5, %6 : vector<8x512xf32>
    %c0_7 = arith.constant 0 : index
    %c0_8 = arith.constant 0 : index
    %8 = vector.load %arg6[%c0_7, %c0_8] : memref<1x128xf32, #tpu.memory_space<vmem>>, vector<1x128xf32>
    %c0_9 = arith.constant 0 : index
    %c0_10 = arith.constant 0 : index
    %9 = vector.load %arg7[%c0_9, %c0_10] : memref<1x128xf32, #tpu.memory_space<vmem>>, vector<1x128xf32>
    %10 = vector.extract_strided_slice %7 {offsets = [0, 0], sizes = [1, 512], strides = [1, 1]} : vector<8x512xf32> to vector<1x512xf32>
    %11 = arith.truncf %8 : vector<1x128xf32> to vector<1x128xbf16>
    %cst_11 = arith.constant dense<0.000000e+00> : vector<1x512xf32>
    %12 = tpu.matmul %11, %3, %cst_11 {dimension_numbers = #tpu.dot_dimension_numbers<[1], [0], [0], [1], [0, 0, 1, 1], [], []>} : vector<1x128xbf16>, vector<128x512xbf16>, vector<1x512xf32> -> vector<1x512xf32>
    %13 = arith.addf %10, %12 : vector<1x512xf32>
    %14 = vector.extract_strided_slice %13 {offsets = [0, 0], sizes = [1, 384], strides = [1, 1]} : vector<1x512xf32> to vector<1x384xf32>
    %15 = arith.negf %14 : vector<1x384xf32>
    %16 = math.exp %15 : vector<1x384xf32>
    %cst_12 = arith.constant 1.000000e+00 : f32
    %17 = vector.broadcast %cst_12 : f32 to vector<1x384xf32>
    %18 = arith.addf %17, %16 : vector<1x384xf32>
    %19 = arith.divf %17, %18 : vector<1x384xf32>
    %20 = vector.extract_strided_slice %19 {offsets = [0, 0], sizes = [1, 128], strides = [1, 1]} : vector<1x384xf32> to vector<1x128xf32>
    %21 = vector.extract_strided_slice %19 {offsets = [0, 128], sizes = [1, 128], strides = [1, 1]} : vector<1x384xf32> to vector<1x128xf32>
    %22 = vector.extract_strided_slice %19 {offsets = [0, 256], sizes = [1, 128], strides = [1, 1]} : vector<1x384xf32> to vector<1x128xf32>
    %23 = vector.extract_strided_slice %13 {offsets = [0, 384], sizes = [1, 128], strides = [1, 1]} : vector<1x512xf32> to vector<1x128xf32>
    %24 = math.tanh %23 : vector<1x128xf32>
    %25 = arith.mulf %21, %9 : vector<1x128xf32>
    %26 = arith.mulf %20, %24 : vector<1x128xf32>
    %27 = arith.addf %25, %26 : vector<1x128xf32>
    %28 = math.tanh %27 : vector<1x128xf32>
    %29 = arith.mulf %22, %28 : vector<1x128xf32>
    %c0_13 = arith.constant 0 : index
    %c0_14 = arith.constant 0 : index
    %30 = vector.load %arg9[%c0_13, %c0_14] : memref<8x128xf32, #tpu.memory_space<vmem>>, vector<1x128xf32>
    tpu.vector_store %arg9[%c0_13, %c0_14], %29 {strides = array<i32>} : memref<8x128xf32, #tpu.memory_space<vmem>>, vector<1x128xf32>,
    %31 = vector.extract_strided_slice %7 {offsets = [1, 0], sizes = [1, 512], strides = [1, 1]} : vector<8x512xf32> to vector<1x512xf32>
    %32 = arith.truncf %29 : vector<1x128xf32> to vector<1x128xbf16>
    %cst_15 = arith.constant dense<0.000000e+00> : vector<1x512xf32>
    %33 = tpu.matmul %32, %3, %cst_15 {dimension_numbers = #tpu.dot_dimension_numbers<[1], [0], [0], [1], [0, 0, 1, 1], [], []>} : vector<1x128xbf16>, vector<128x512xbf16>, vector<1x512xf32> -> vector<1x512xf32>
    %34 = arith.addf %31, %33 : vector<1x512xf32>
    %35 = vector.extract_strided_slice %34 {offsets = [0, 0], sizes = [1, 384], strides = [1, 1]} : vector<1x512xf32> to vector<1x384xf32>
    %36 = arith.negf %35 : vector<1x384xf32>
    %37 = math.exp %36 : vector<1x384xf32>
    %cst_16 = arith.constant 1.000000e+00 : f32
    %38 = vector.broadcast %cst_16 : f32 to vector<1x384xf32>
    %39 = arith.addf %38, %37 : vector<1x384xf32>
    %40 = arith.divf %38, %39 : vector<1x384xf32>
    %41 = vector.extract_strided_slice %40 {offsets = [0, 0], sizes = [1, 128], strides = [1, 1]} : vector<1x384xf32> to vector<1x128xf32>
    %42 = vector.extract_strided_slice %40 {offsets = [0, 128], sizes = [1, 128], strides = [1, 1]} : vector<1x384xf32> to vector<1x128xf32>
    %43 = vector.extract_strided_slice %40 {offsets = [0, 256], sizes = [1, 128], strides = [1, 1]} : vector<1x384xf32> to vector<1x128xf32>
    %44 = vector.extract_strided_slice %34 {offsets = [0, 384], sizes = [1, 128], strides = [1, 1]} : vector<1x512xf32> to vector<1x128xf32>
    %45 = math.tanh %44 : vector<1x128xf32>
    %46 = arith.mulf %42, %27 : vector<1x128xf32>
    %47 = arith.mulf %41, %45 : vector<1x128xf32>
    %48 = arith.addf %46, %47 : vector<1x128xf32>
    %49 = math.tanh %48 : vector<1x128xf32>
    %50 = arith.mulf %43, %49 : vector<1x128xf32>
    %c1 = arith.constant 1 : index
    %c0_17 = arith.constant 0 : index
    %51 = vector.load %arg9[%c1, %c0_17] : memref<8x128xf32, #tpu.memory_space<vmem>>, vector<1x128xf32>
    tpu.vector_store %arg9[%c1, %c0_17], %50 {strides = array<i32>} : memref<8x128xf32, #tpu.memory_space<vmem>>, vector<1x128xf32>,
    %52 = vector.extract_strided_slice %7 {offsets = [2, 0], sizes = [1, 512], strides = [1, 1]} : vector<8x512xf32> to vector<1x512xf32>
    %53 = arith.truncf %50 : vector<1x128xf32> to vector<1x128xbf16>
    %cst_18 = arith.constant dense<0.000000e+00> : vector<1x512xf32>
    %54 = tpu.matmul %53, %3, %cst_18 {dimension_numbers = #tpu.dot_dimension_numbers<[1], [0], [0], [1], [0, 0, 1, 1], [], []>} : vector<1x128xbf16>, vector<128x512xbf16>, vector<1x512xf32> -> vector<1x512xf32>
    %55 = arith.addf %52, %54 : vector<1x512xf32>
    %56 = vector.extract_strided_slice %55 {offsets = [0, 0], sizes = [1, 384], strides = [1, 1]} : vector<1x512xf32> to vector<1x384xf32>
    %57 = arith.negf %56 : vector<1x384xf32>
    %58 = math.exp %57 : vector<1x384xf32>
    %cst_19 = arith.constant 1.000000e+00 : f32
    %59 = vector.broadcast %cst_19 : f32 to vector<1x384xf32>
    %60 = arith.addf %59, %58 : vector<1x384xf32>
    %61 = arith.divf %59, %60 : vector<1x384xf32>
    %62 = vector.extract_strided_slice %61 {offsets = [0, 0], sizes = [1, 128], strides = [1, 1]} : vector<1x384xf32> to vector<1x128xf32>
    %63 = vector.extract_strided_slice %61 {offsets = [0, 128], sizes = [1, 128], strides = [1, 1]} : vector<1x384xf32> to vector<1x128xf32>
    %64 = vector.extract_strided_slice %61 {offsets = [0, 256], sizes = [1, 128], strides = [1, 1]} : vector<1x384xf32> to vector<1x128xf32>
    %65 = vector.extract_strided_slice %55 {offsets = [0, 384], sizes = [1, 128], strides = [1, 1]} : vector<1x512xf32> to vector<1x128xf32>
    %66 = math.tanh %65 : vector<1x128xf32>
    %67 = arith.mulf %63, %48 : vector<1x128xf32>
    %68 = arith.mulf %62, %66 : vector<1x128xf32>
    %69 = arith.addf %67, %68 : vector<1x128xf32>
    %70 = math.tanh %69 : vector<1x128xf32>
    %71 = arith.mulf %64, %70 : vector<1x128xf32>
    %c2 = arith.constant 2 : index
    %c0_20 = arith.constant 0 : index
    %72 = vector.load %arg9[%c2, %c0_20] : memref<8x128xf32, #tpu.memory_space<vmem>>, vector<1x128xf32>
    tpu.vector_store %arg9[%c2, %c0_20], %71 {strides = array<i32>} : memref<8x128xf32, #tpu.memory_space<vmem>>, vector<1x128xf32>,
    %73 = vector.extract_strided_slice %7 {offsets = [3, 0], sizes = [1, 512], strides = [1, 1]} : vector<8x512xf32> to vector<1x512xf32>
    %74 = arith.truncf %71 : vector<1x128xf32> to vector<1x128xbf16>
    %cst_21 = arith.constant dense<0.000000e+00> : vector<1x512xf32>
    %75 = tpu.matmul %74, %3, %cst_21 {dimension_numbers = #tpu.dot_dimension_numbers<[1], [0], [0], [1], [0, 0, 1, 1], [], []>} : vector<1x128xbf16>, vector<128x512xbf16>, vector<1x512xf32> -> vector<1x512xf32>
    %76 = arith.addf %73, %75 : vector<1x512xf32>
    %77 = vector.extract_strided_slice %76 {offsets = [0, 0], sizes = [1, 384], strides = [1, 1]} : vector<1x512xf32> to vector<1x384xf32>
    %78 = arith.negf %77 : vector<1x384xf32>
    %79 = math.exp %78 : vector<1x384xf32>
    %cst_22 = arith.constant 1.000000e+00 : f32
    %80 = vector.broadcast %cst_22 : f32 to vector<1x384xf32>
    %81 = arith.addf %80, %79 : vector<1x384xf32>
    %82 = arith.divf %80, %81 : vector<1x384xf32>
    %83 = vector.extract_strided_slice %82 {offsets = [0, 0], sizes = [1, 128], strides = [1, 1]} : vector<1x384xf32> to vector<1x128xf32>
    %84 = vector.extract_strided_slice %82 {offsets = [0, 128], sizes = [1, 128], strides = [1, 1]} : vector<1x384xf32> to vector<1x128xf32>
    %85 = vector.extract_strided_slice %82 {offsets = [0, 256], sizes = [1, 128], strides = [1, 1]} : vector<1x384xf32> to vector<1x128xf32>
    %86 = vector.extract_strided_slice %76 {offsets = [0, 384], sizes = [1, 128], strides = [1, 1]} : vector<1x512xf32> to vector<1x128xf32>
    %87 = math.tanh %86 : vector<1x128xf32>
    %88 = arith.mulf %84, %69 : vector<1x128xf32>
    %89 = arith.mulf %83, %87 : vector<1x128xf32>
    %90 = arith.addf %88, %89 : vector<1x128xf32>
    %91 = math.tanh %90 : vector<1x128xf32>
    %92 = arith.mulf %85, %91 : vector<1x128xf32>
    %c3 = arith.constant 3 : index
    %c0_23 = arith.constant 0 : index
    %93 = vector.load %arg9[%c3, %c0_23] : memref<8x128xf32, #tpu.memory_space<vmem>>, vector<1x128xf32>
    tpu.vector_store %arg9[%c3, %c0_23], %92 {strides = array<i32>} : memref<8x128xf32, #tpu.memory_space<vmem>>, vector<1x128xf32>,
    %94 = vector.extract_strided_slice %7 {offsets = [4, 0], sizes = [1, 512], strides = [1, 1]} : vector<8x512xf32> to vector<1x512xf32>
    %95 = arith.truncf %92 : vector<1x128xf32> to vector<1x128xbf16>
    %cst_24 = arith.constant dense<0.000000e+00> : vector<1x512xf32>
    %96 = tpu.matmul %95, %3, %cst_24 {dimension_numbers = #tpu.dot_dimension_numbers<[1], [0], [0], [1], [0, 0, 1, 1], [], []>} : vector<1x128xbf16>, vector<128x512xbf16>, vector<1x512xf32> -> vector<1x512xf32>
    %97 = arith.addf %94, %96 : vector<1x512xf32>
    %98 = vector.extract_strided_slice %97 {offsets = [0, 0], sizes = [1, 384], strides = [1, 1]} : vector<1x512xf32> to vector<1x384xf32>
    %99 = arith.negf %98 : vector<1x384xf32>
    %100 = math.exp %99 : vector<1x384xf32>
    %cst_25 = arith.constant 1.000000e+00 : f32
    %101 = vector.broadcast %cst_25 : f32 to vector<1x384xf32>
    %102 = arith.addf %101, %100 : vector<1x384xf32>
    %103 = arith.divf %101, %102 : vector<1x384xf32>
    %104 = vector.extract_strided_slice %103 {offsets = [0, 0], sizes = [1, 128], strides = [1, 1]} : vector<1x384xf32> to vector<1x128xf32>
    %105 = vector.extract_strided_slice %103 {offsets = [0, 128], sizes = [1, 128], strides = [1, 1]} : vector<1x384xf32> to vector<1x128xf32>
    %106 = vector.extract_strided_slice %103 {offsets = [0, 256], sizes = [1, 128], strides = [1, 1]} : vector<1x384xf32> to vector<1x128xf32>
    %107 = vector.extract_strided_slice %97 {offsets = [0, 384], sizes = [1, 128], strides = [1, 1]} : vector<1x512xf32> to vector<1x128xf32>
    %108 = math.tanh %107 : vector<1x128xf32>
    %109 = arith.mulf %105, %90 : vector<1x128xf32>
    %110 = arith.mulf %104, %108 : vector<1x128xf32>
    %111 = arith.addf %109, %110 : vector<1x128xf32>
    %112 = math.tanh %111 : vector<1x128xf32>
    %113 = arith.mulf %106, %112 : vector<1x128xf32>
    %c4 = arith.constant 4 : index
    %c0_26 = arith.constant 0 : index
    %114 = vector.load %arg9[%c4, %c0_26] : memref<8x128xf32, #tpu.memory_space<vmem>>, vector<1x128xf32>
    tpu.vector_store %arg9[%c4, %c0_26], %113 {strides = array<i32>} : memref<8x128xf32, #tpu.memory_space<vmem>>, vector<1x128xf32>,
    %115 = vector.extract_strided_slice %7 {offsets = [5, 0], sizes = [1, 512], strides = [1, 1]} : vector<8x512xf32> to vector<1x512xf32>
    %116 = arith.truncf %113 : vector<1x128xf32> to vector<1x128xbf16>
    %cst_27 = arith.constant dense<0.000000e+00> : vector<1x512xf32>
    %117 = tpu.matmul %116, %3, %cst_27 {dimension_numbers = #tpu.dot_dimension_numbers<[1], [0], [0], [1], [0, 0, 1, 1], [], []>} : vector<1x128xbf16>, vector<128x512xbf16>, vector<1x512xf32> -> vector<1x512xf32>
    %118 = arith.addf %115, %117 : vector<1x512xf32>
    %119 = vector.extract_strided_slice %118 {offsets = [0, 0], sizes = [1, 384], strides = [1, 1]} : vector<1x512xf32> to vector<1x384xf32>
    %120 = arith.negf %119 : vector<1x384xf32>
    %121 = math.exp %120 : vector<1x384xf32>
    %cst_28 = arith.constant 1.000000e+00 : f32
    %122 = vector.broadcast %cst_28 : f32 to vector<1x384xf32>
    %123 = arith.addf %122, %121 : vector<1x384xf32>
    %124 = arith.divf %122, %123 : vector<1x384xf32>
    %125 = vector.extract_strided_slice %124 {offsets = [0, 0], sizes = [1, 128], strides = [1, 1]} : vector<1x384xf32> to vector<1x128xf32>
    %126 = vector.extract_strided_slice %124 {offsets = [0, 128], sizes = [1, 128], strides = [1, 1]} : vector<1x384xf32> to vector<1x128xf32>
    %127 = vector.extract_strided_slice %124 {offsets = [0, 256], sizes = [1, 128], strides = [1, 1]} : vector<1x384xf32> to vector<1x128xf32>
    %128 = vector.extract_strided_slice %118 {offsets = [0, 384], sizes = [1, 128], strides = [1, 1]} : vector<1x512xf32> to vector<1x128xf32>
    %129 = math.tanh %128 : vector<1x128xf32>
    %130 = arith.mulf %126, %111 : vector<1x128xf32>
    %131 = arith.mulf %125, %129 : vector<1x128xf32>
    %132 = arith.addf %130, %131 : vector<1x128xf32>
    %133 = math.tanh %132 : vector<1x128xf32>
    %134 = arith.mulf %127, %133 : vector<1x128xf32>
    %c5 = arith.constant 5 : index
    %c0_29 = arith.constant 0 : index
    %135 = vector.load %arg9[%c5, %c0_29] : memref<8x128xf32, #tpu.memory_space<vmem>>, vector<1x128xf32>
    tpu.vector_store %arg9[%c5, %c0_29], %134 {strides = array<i32>} : memref<8x128xf32, #tpu.memory_space<vmem>>, vector<1x128xf32>,
    %136 = vector.extract_strided_slice %7 {offsets = [6, 0], sizes = [1, 512], strides = [1, 1]} : vector<8x512xf32> to vector<1x512xf32>
    %137 = arith.truncf %134 : vector<1x128xf32> to vector<1x128xbf16>
    %cst_30 = arith.constant dense<0.000000e+00> : vector<1x512xf32>
    %138 = tpu.matmul %137, %3, %cst_30 {dimension_numbers = #tpu.dot_dimension_numbers<[1], [0], [0], [1], [0, 0, 1, 1], [], []>} : vector<1x128xbf16>, vector<128x512xbf16>, vector<1x512xf32> -> vector<1x512xf32>
    %139 = arith.addf %136, %138 : vector<1x512xf32>
    %140 = vector.extract_strided_slice %139 {offsets = [0, 0], sizes = [1, 384], strides = [1, 1]} : vector<1x512xf32> to vector<1x384xf32>
    %141 = arith.negf %140 : vector<1x384xf32>
    %142 = math.exp %141 : vector<1x384xf32>
    %cst_31 = arith.constant 1.000000e+00 : f32
    %143 = vector.broadcast %cst_31 : f32 to vector<1x384xf32>
    %144 = arith.addf %143, %142 : vector<1x384xf32>
    %145 = arith.divf %143, %144 : vector<1x384xf32>
    %146 = vector.extract_strided_slice %145 {offsets = [0, 0], sizes = [1, 128], strides = [1, 1]} : vector<1x384xf32> to vector<1x128xf32>
    %147 = vector.extract_strided_slice %145 {offsets = [0, 128], sizes = [1, 128], strides = [1, 1]} : vector<1x384xf32> to vector<1x128xf32>
    %148 = vector.extract_strided_slice %145 {offsets = [0, 256], sizes = [1, 128], strides = [1, 1]} : vector<1x384xf32> to vector<1x128xf32>
    %149 = vector.extract_strided_slice %139 {offsets = [0, 384], sizes = [1, 128], strides = [1, 1]} : vector<1x512xf32> to vector<1x128xf32>
    %150 = math.tanh %149 : vector<1x128xf32>
    %151 = arith.mulf %147, %132 : vector<1x128xf32>
    %152 = arith.mulf %146, %150 : vector<1x128xf32>
    %153 = arith.addf %151, %152 : vector<1x128xf32>
    %154 = math.tanh %153 : vector<1x128xf32>
    %155 = arith.mulf %148, %154 : vector<1x128xf32>
    %c6 = arith.constant 6 : index
    %c0_32 = arith.constant 0 : index
    %156 = vector.load %arg9[%c6, %c0_32] : memref<8x128xf32, #tpu.memory_space<vmem>>, vector<1x128xf32>
    tpu.vector_store %arg9[%c6, %c0_32], %155 {strides = array<i32>} : memref<8x128xf32, #tpu.memory_space<vmem>>, vector<1x128xf32>,
    %157 = vector.extract_strided_slice %7 {offsets = [7, 0], sizes = [1, 512], strides = [1, 1]} : vector<8x512xf32> to vector<1x512xf32>
    %158 = arith.truncf %155 : vector<1x128xf32> to vector<1x128xbf16>
    %cst_33 = arith.constant dense<0.000000e+00> : vector<1x512xf32>
    %159 = tpu.matmul %158, %3, %cst_33 {dimension_numbers = #tpu.dot_dimension_numbers<[1], [0], [0], [1], [0, 0, 1, 1], [], []>} : vector<1x128xbf16>, vector<128x512xbf16>, vector<1x512xf32> -> vector<1x512xf32>
    %160 = arith.addf %157, %159 : vector<1x512xf32>
    %161 = vector.extract_strided_slice %160 {offsets = [0, 0], sizes = [1, 384], strides = [1, 1]} : vector<1x512xf32> to vector<1x384xf32>
    %162 = arith.negf %161 : vector<1x384xf32>
    %163 = math.exp %162 : vector<1x384xf32>
    %cst_34 = arith.constant 1.000000e+00 : f32
    %164 = vector.broadcast %cst_34 : f32 to vector<1x384xf32>
    %165 = arith.addf %164, %163 : vector<1x384xf32>
    %166 = arith.divf %164, %165 : vector<1x384xf32>
    %167 = vector.extract_strided_slice %166 {offsets = [0, 0], sizes = [1, 128], strides = [1, 1]} : vector<1x384xf32> to vector<1x128xf32>
    %168 = vector.extract_strided_slice %166 {offsets = [0, 128], sizes = [1, 128], strides = [1, 1]} : vector<1x384xf32> to vector<1x128xf32>
    %169 = vector.extract_strided_slice %166 {offsets = [0, 256], sizes = [1, 128], strides = [1, 1]} : vector<1x384xf32> to vector<1x128xf32>
    %170 = vector.extract_strided_slice %160 {offsets = [0, 384], sizes = [1, 128], strides = [1, 1]} : vector<1x512xf32> to vector<1x128xf32>
    %171 = math.tanh %170 : vector<1x128xf32>
    %172 = arith.mulf %168, %153 : vector<1x128xf32>
    %173 = arith.mulf %167, %171 : vector<1x128xf32>
    %174 = arith.addf %172, %173 : vector<1x128xf32>
    %175 = math.tanh %174 : vector<1x128xf32>
    %176 = arith.mulf %169, %175 : vector<1x128xf32>
    %c7 = arith.constant 7 : index
    %c0_35 = arith.constant 0 : index
    %177 = vector.load %arg9[%c7, %c0_35] : memref<8x128xf32, #tpu.memory_space<vmem>>, vector<1x128xf32>
    tpu.vector_store %arg9[%c7, %c0_35], %176 {strides = array<i32>} : memref<8x128xf32, #tpu.memory_space<vmem>>, vector<1x128xf32>,
    %c0_36 = arith.constant 0 : index
    %c0_37 = arith.constant 0 : index
    %178 = vector.load %arg9[%c0_36, %c0_37] : memref<8x128xf32, #tpu.memory_space<vmem>>, vector<8x128xf32>
    %179 = arith.truncf %178 : vector<8x128xf32> to vector<8x128xbf16>
    %c0_38 = arith.constant 0 : index
    %c0_39 = arith.constant 0 : index
    %180 = vector.load %arg4[%c0_38, %c0_39] : memref<128x256xbf16, #tpu.memory_space<vmem>>, vector<128x256xbf16>
    %cst_40 = arith.constant dense<0.000000e+00> : vector<8x256xf32>
    %181 = tpu.matmul %179, %180, %cst_40 {dimension_numbers = #tpu.dot_dimension_numbers<[1], [0], [0], [1], [0, 0, 1, 1], [], []>} : vector<8x128xbf16>, vector<128x256xbf16>, vector<8x256xf32> -> vector<8x256xf32>
    %c0_41 = arith.constant 0 : index
    %c0_42 = arith.constant 0 : index
    %182 = vector.load %arg5[%c0_41, %c0_42] : memref<1x256xf32, #tpu.memory_space<vmem>>, vector<1x256xf32>
    %183 = vector.broadcast %182 : vector<1x256xf32> to vector<8x256xf32>
    %184 = arith.addf %181, %183 : vector<8x256xf32>
    %cst_43 = arith.constant dense<0xFF800000> : vector<8xf32>
    %185 = vector.multi_reduction <maximumf>, %184, %cst_43 [1] : vector<8x256xf32> to vector<8xf32>
    %186 = vector.shape_cast %185 : vector<8xf32> to vector<8x1xf32>
    %187 = vector.broadcast %186 : vector<8x1xf32> to vector<8x256xf32>
    %188 = arith.subf %184, %187 : vector<8x256xf32>
    %189 = math.exp %188 : vector<8x256xf32>
    %cst_44 = arith.constant dense<0.000000e+00> : vector<8xf32>
    %190 = vector.multi_reduction <add>, %189, %cst_44 [1] : vector<8x256xf32> to vector<8xf32>
    %191 = vector.shape_cast %190 : vector<8xf32> to vector<8x1xf32>
    %192 = math.log %191 : vector<8x1xf32>
    %193 = arith.addf %186, %192 : vector<8x1xf32>
    %194 = vector.broadcast %193 : vector<8x1xf32> to vector<8x256xf32>
    %195 = arith.subf %184, %194 : vector<8x256xf32>
    %c0_45 = arith.constant 0 : index
    %c0_46 = arith.constant 0 : index
    %196 = vector.load %arg8[%c0_45, %c0_46] : memref<8x256xf32, #tpu.memory_space<vmem>>, vector<8x256xf32>
    tpu.vector_store %arg8[%c0_45, %c0_46], %195 {strides = array<i32>} : memref<8x256xf32, #tpu.memory_space<vmem>>, vector<8x256xf32>,
    return
  }
}

</mosaic_0001>

<llo_original>
// kernel: tpu_custom_call.1
$region0: #{tpu_custom_call.1}
  #allocation0 [shape = 'u32[]', space=smem, size = 0x4, offset = 0x4, fixed_abs, tag = 'smem constant byte address 0x4 - core index']
  #allocation1 [shape = 'u32[72,128]{1,0:T(1,128)}', space=vmem, size = 0x9000, scoped, tag = 'internal scratch']
  #allocation2 [shape = 'f32[8,128]{1,0:T(8,128)}', space=vmem, size = 0x1000, scoped, tag = 'scratch operand']
  %s0 = inlined_call_operand.hbm [shape: f32[8,16], index: 0, kind: input, shape index: {}]
  %s1 = inlined_call_operand.hbm [shape: bf16[16,512], index: 1, kind: input, shape index: {}]
  %s2 = inlined_call_operand.hbm [shape: bf16[128,512], index: 2, kind: input, shape index: {}]
  %s3 = inlined_call_operand.hbm [shape: f32[1,512], index: 3, kind: input, shape index: {}]
  %s4 = inlined_call_operand.hbm [shape: bf16[128,256], index: 4, kind: input, shape index: {}]
  %s5 = inlined_call_operand.vmem [shape: f32[1,256], index: 5, kind: input, shape index: {}]
  %s6 = inlined_call_operand.vmem [shape: f32[1,128], index: 6, kind: input, shape index: {}]
  %s7 = inlined_call_operand.vmem [shape: f32[1,128], index: 7, kind: input, shape index: {}]
  %s8 = inlined_call_operand.hbm [shape: f32[8,256], index: 8, kind: output, shape index: {}]
  %s9 = sld [smem:[#allocation0]]
  $region62: #{tpu_custom_call.1} parent=0
    _
  %s11 = ssub.s32 1, %s9
  %s12 = scalar_select 0, %s11, %s9
  $region1: #{tpu_custom_call.1} parent=0
    #allocation3 [shape = 'u8[4096]{0}', space=vmem, size = 0x1000, scoped, tag = 'input window, operand 0, single buffered']
    #allocation4 [shape = 's32[1]{0}', space=sflag, size = 0x4, scoped, tag = 'scoped memory for tpu_custom_call.1']
    #allocation5 [shape = 's32[1]{0}', space=sflag, size = 0x4, scoped, tag = 'scoped memory for tpu_custom_call.1']
    #allocation6 [shape = 'u8[16384]{0}', space=vmem, size = 0x4000, scoped, tag = 'input window, operand 1, single buffered']
    #allocation7 [shape = 's32[1]{0}', space=sflag, size = 0x4, scoped, tag = 'scoped memory for tpu_custom_call.1']
    #allocation8 [shape = 'u8[131072]{0}', space=vmem, size = 0x20000, scoped, tag = 'input window, operand 2, single buffered']
    #allocation9 [shape = 'u8[2048]{0}', space=vmem, size = 0x800, scoped, tag = 'input window, operand 3, single buffered']
    #allocation10 [shape = 's32[1]{0}', space=sflag, size = 0x4, scoped, tag = 'scoped memory for tpu_custom_call.1']
    #allocation11 [shape = 'u8[65536]{0}', space=vmem, size = 0x10000, scoped, tag = 'input window, operand 4, single buffered']
    #allocation12 [shape = 'u8[8192]{0}', space=vmem, size = 0x2000, scoped, tag = 'output window, operand 0, single buffered']
    %13 = vsyncpa [#allocation4], 0
    %14 = vsyncpa [#allocation7], 0
    %15 = vsyncpa [#allocation10], 0
    %16 = vsyncpa [#allocation5], 0
    // Predicated region
    $region2: #{tpu_custom_call.1} parent=1 // pred_check
      _
    $region3: #{tpu_custom_call.1} parent=1 // pred_check_branch
      %18 = sbr.rel (0) target = $region5
    $region4: #{tpu_custom_call.1} parent=1 // pred_region
      %20 = vsyncadd [#allocation4], 0
      %s22 = sshll.u32 %s0, 4
      %s23 = int_to_ptr.hbm [resolvable:$true] %s22
      %s24 = sshll.u32 [#allocation3], 4
      %s25 = int_to_ptr.vmem [resolvable:$true] %s24
      %27 = dma.hbm_to_vmem [thread:$0]  %s23, 128, %s25, [#allocation4]
    $region5: #{tpu_custom_call.1} parent=1 // pred_fallthru
      _
    // Predicated region
    $region6: #{tpu_custom_call.1} parent=1 // pred_check
      _
    $region7: #{tpu_custom_call.1} parent=1 // pred_check_branch
      %29 = sbr.rel (0) target = $region9
    $region8: #{tpu_custom_call.1} parent=1 // pred_region
      %31 = vsyncadd [#allocation7], 0
      %s32 = sshll.u32 %s1, 4
      %s33 = int_to_ptr.hbm [resolvable:$true] %s32
      %s34 = sshll.u32 [#allocation6], 4
      %s35 = int_to_ptr.vmem [resolvable:$true] %s34
      %40 = dma.hbm_to_vmem [thread:$0]  %s33, 512, %s35, [#allocation7], 256, 256, 16
    $region9: #{tpu_custom_call.1} parent=1 // pred_fallthru
      _
    // Predicated region
    $region10: #{tpu_custom_call.1} parent=1 // pred_check
      _
    $region11: #{tpu_custom_call.1} parent=1 // pred_check_branch
      %42 = sbr.rel (0) target = $region13
    $region12: #{tpu_custom_call.1} parent=1 // pred_region
      %44 = vsyncadd [#allocation7], 0
      %s45 = sshll.u32 %s2, 4
      %s46 = int_to_ptr.hbm [resolvable:$true] %s45
      %s47 = sshll.u32 [#allocation8], 4
      %s48 = int_to_ptr.vmem [resolvable:$true] %s47
      %53 = dma.hbm_to_vmem [thread:$0]  %s46, 4096, %s48, [#allocation7], 256, 256, 16
    $region13: #{tpu_custom_call.1} parent=1 // pred_fallthru
      _
    // Predicated region
    $region14: #{tpu_custom_call.1} parent=1 // pred_check
      _
    $region15: #{tpu_custom_call.1} parent=1 // pred_check_branch
      %55 = sbr.rel (0) target = $region17
    $region16: #{tpu_custom_call.1} parent=1 // pred_region
      %57 = vsyncadd [#allocation10], 0
      %s59 = sshll.u32 %s3, 4
      %s60 = int_to_ptr.hbm [resolvable:$true] %s59
      %s61 = sshll.u32 [#allocation9], 4
      %s62 = int_to_ptr.vmem [resolvable:$true] %s61
      %64 = dma.hbm_to_vmem [thread:$0]  %s60, 64, %s62, [#allocation10]
    $region17: #{tpu_custom_call.1} parent=1 // pred_fallthru
      _
    // Predicated region
    $region18: #{tpu_custom_call.1} parent=1 // pred_check
      _
    $region19: #{tpu_custom_call.1} parent=1 // pred_check_branch
      %66 = sbr.rel (0) target = $region21
    $region20: #{tpu_custom_call.1} parent=1 // pred_region
      %68 = vsyncadd [#allocation10], 0
      %s69 = sshll.u32 %s4, 4
      %s70 = int_to_ptr.hbm [resolvable:$true] %s69
      %s71 = sshll.u32 [#allocation11], 4
      %s72 = int_to_ptr.vmem [resolvable:$true] %s71
      %77 = dma.hbm_to_vmem [thread:$0]  %s70, 2048, %s72, [#allocation10], 128, 128, 8
    $region21: #{tpu_custom_call.1} parent=1 // pred_fallthru
      _
    // Predicated region
    $region22: #{tpu_custom_call.1} parent=1 // pred_check
      _
    $region23: #{tpu_custom_call.1} parent=1 // pred_check_branch
      %79 = sbr.rel (0) target = $region25
    $region24: #{tpu_custom_call.1} parent=1 // pred_region
      _
    $region25: #{tpu_custom_call.1} parent=1 // pred_fallthru
      _
    // Predicated region
    $region26: #{tpu_custom_call.1} parent=1 // pred_check
      _
    $region27: #{tpu_custom_call.1} parent=1 // pred_check_branch
      %81 = sbr.rel (0) target = $region29
    $region28: #{tpu_custom_call.1} parent=1 // pred_region
      _
    $region29: #{tpu_custom_call.1} parent=1 // pred_fallthru
      _
    // Predicated region
    $region30: #{tpu_custom_call.1} parent=1 // pred_check
      _
    $region31: #{tpu_custom_call.1} parent=1 // pred_check_branch
      %83 = sbr.rel (0) target = $region33
    $region32: #{tpu_custom_call.1} parent=1 // pred_region
      _
    $region33: #{tpu_custom_call.1} parent=1 // pred_fallthru
      _
    // Predicated region
    $region34: #{tpu_custom_call.1} parent=1 // pred_check
      _
    $region35: #{tpu_custom_call.1} parent=1 // pred_check_branch
      %85 = sbr.rel (0) target = $region37
    $region36: #{tpu_custom_call.1} parent=1 // pred_region
      %87 = dma.done [#allocation4], 128
    $region37: #{tpu_custom_call.1} parent=1 // pred_fallthru
      _
    // Predicated region
    $region38: #{tpu_custom_call.1} parent=1 // pred_check
      _
    $region39: #{tpu_custom_call.1} parent=1 // pred_check_branch
      %89 = sbr.rel (0) target = $region41
    $region40: #{tpu_custom_call.1} parent=1 // pred_region
      %91 = dma.done [#allocation7], 512
    $region41: #{tpu_custom_call.1} parent=1 // pred_fallthru
      _
    // Predicated region
    $region42: #{tpu_custom_call.1} parent=1 // pred_check
      _
    $region43: #{tpu_custom_call.1} parent=1 // pred_check_branch
      %93 = sbr.rel (0) target = $region45
    $region44: #{tpu_custom_call.1} parent=1 // pred_region
      %95 = dma.done [#allocation7], 4096
    $region45: #{tpu_custom_call.1} parent=1 // pred_fallthru
      _
    // Predicated region
    $region46: #{tpu_custom_call.1} parent=1 // pred_check
      _
    $region47: #{tpu_custom_call.1} parent=1 // pred_check_branch
      %97 = sbr.rel (0) target = $region49
    $region48: #{tpu_custom_call.1} parent=1 // pred_region
      %99 = dma.done [#allocation10], 64
    $region49: #{tpu_custom_call.1} parent=1 // pred_fallthru
      _
    // Predicated region
    $region50: #{tpu_custom_call.1} parent=1 // pred_check
      _
    $region51: #{tpu_custom_call.1} parent=1 // pred_check_branch
      %101 = sbr.rel (0) target = $region53
    $region52: #{tpu_custom_call.1} parent=1 // pred_region
      %103 = dma.done [#allocation10], 2048
    $region53: #{tpu_custom_call.1} parent=1 // pred_fallthru
      _
    %v105 = vld [vmem:[#allocation3] sm:$0xff]
    %v106 = vpack.c.bf16 %v105, %v105
    %v107 = vld [vmem:[#allocation6] sm:$0xff]
    %v108 = vld [vmem:[#allocation6 + $0x8] sm:$0xff]
    %v109 = vld [vmem:[#allocation6 + $0x10] sm:$0xff]
    %v110 = vld [vmem:[#allocation6 + $0x18] sm:$0xff]
    %v111 = vld [vmem:[#allocation8] sm:$0xff]
    %v112 = vld [vmem:[#allocation8 + $0x8] sm:$0xff]
    %v113 = vld [vmem:[#allocation8 + $0x10] sm:$0xff]
    %v114 = vld [vmem:[#allocation8 + $0x18] sm:$0xff]
    %v115 = vld [vmem:[#allocation8 + $0x20] sm:$0xff]
    %v116 = vld [vmem:[#allocation8 + $0x28] sm:$0xff]
    %v117 = vld [vmem:[#allocation8 + $0x30] sm:$0xff]
    %v118 = vld [vmem:[#allocation8 + $0x38] sm:$0xff]
    %v119 = vld [vmem:[#allocation8 + $0x40] sm:$0xff]
    %v120 = vld [vmem:[#allocation8 + $0x48] sm:$0xff]
    %v121 = vld [vmem:[#allocation8 + $0x50] sm:$0xff]
    %v122 = vld [vmem:[#allocation8 + $0x58] sm:$0xff]
    %v123 = vld [vmem:[#allocation8 + $0x60] sm:$0xff]
    %v124 = vld [vmem:[#allocation8 + $0x68] sm:$0xff]
    %v125 = vld [vmem:[#allocation8 + $0x70] sm:$0xff]
    %v126 = vld [vmem:[#allocation8 + $0x78] sm:$0xff]
    %v127 = vld [vmem:[#allocation8 + $0x80] sm:$0xff]
    %v128 = vld [vmem:[#allocation8 + $0x88] sm:$0xff]
    %v129 = vld [vmem:[#allocation8 + $0x90] sm:$0xff]
    %v130 = vld [vmem:[#allocation8 + $0x98] sm:$0xff]
    %v131 = vld [vmem:[#allocation8 + $0xa0] sm:$0xff]
    %v132 = vld [vmem:[#allocation8 + $0xa8] sm:$0xff]
    %v133 = vld [vmem:[#allocation8 + $0xb0] sm:$0xff]
    %v134 = vld [vmem:[#allocation8 + $0xb8] sm:$0xff]
    %v135 = vld [vmem:[#allocation8 + $0xc0] sm:$0xff]
    %v136 = vld [vmem:[#allocation8 + $0xc8] sm:$0xff]
    %v137 = vld [vmem:[#allocation8 + $0xd0] sm:$0xff]
    %v138 = vld [vmem:[#allocation8 + $0xd8] sm:$0xff]
    %v139 = vld [vmem:[#allocation8 + $0xe0] sm:$0xff]
    %v140 = vld [vmem:[#allocation8 + $0xe8] sm:$0xff]
    %v141 = vld [vmem:[#allocation8 + $0xf0] sm:$0xff]
    %v142 = vld [vmem:[#allocation8 + $0xf8] sm:$0xff]
    %v143 = vld [vmem:[#allocation9] sm:$0xf]
    %v145 = vperm.slane %v143, 0
    %v146 = vperm.slane %v143, 1
    %v147 = vperm.slane %v143, 2
    %v148 = vperm.slane %v143, 3
    %v157 = vunpack.c.l.b16 %v107
    %v158 = vunpack.c.h.b16 %v107
    %v159 = vunpack.c.l.b16 %v108
    %v160 = vunpack.c.h.b16 %v108
    %v161 = vunpack.c.l.b16 %v109
    %v162 = vunpack.c.h.b16 %v109
    %v163 = vunpack.c.l.b16 %v110
    %v164 = vunpack.c.h.b16 %v110
    %v165 = vpack.c.b16 %v161, %v157
    %v166 = vpack.c.b16 %v162, %v158
    %v167 = vpack.c.b16 %v163, %v159
    %v168 = vpack.c.b16 %v164, %v160
    %vm173 = vcmask 130048
    %v175 = vsel %vm173, %v106, 0
    %177 = vmatpush.bf16.msra.mxu0 0
    %178 = vmatpush.bf16.msra.mxu0 0
    %179 = vmatpush.bf16.msra.mxu0 0
    %180 = vmatpush.bf16.msra.mxu0 0
    %181 = vmatpush.bf16.msra.mxu0 0
    %182 = vmatpush.bf16.msra.mxu0 0
    %183 = vmatpush.bf16.msra.mxu0 0
    %184 = vmatpush.bf16.msra.mxu0 %v165
    %185 = vmatmul.bf16.gmra.mxu0 %v175
    %v186 = vpop.f32.mrf.mxu0
    %v187 = vadd.f32 %v145, %v186
    %v188 = vpop.f32.mrf.mxu0
    %189 = vdwg.mxu0
    %190 = vmatpush.bf16.msra.mxu0 0
    %191 = vmatpush.bf16.msra.mxu0 0
    %192 = vmatpush.bf16.msra.mxu0 0
    %193 = vmatpush.bf16.msra.mxu0 0
    %194 = vmatpush.bf16.msra.mxu0 0
    %195 = vmatpush.bf16.msra.mxu0 0
    %196 = vmatpush.bf16.msra.mxu0 0
    %197 = vmatpush.bf16.msra.mxu0 %v166
    %198 = vmatmul.bf16.gmra.mxu0 %v175
    %v199 = vpop.f32.mrf.mxu0
    %v200 = vadd.f32 %v146, %v199
    %v201 = vpop.f32.mrf.mxu0
    %202 = vdwg.mxu0
    %203 = vmatpush.bf16.msra.mxu0 0
    %204 = vmatpush.bf16.msra.mxu0 0
    %205 = vmatpush.bf16.msra.mxu0 0
    %206 = vmatpush.bf16.msra.mxu0 0
    %207 = vmatpush.bf16.msra.mxu0 0
    %208 = vmatpush.bf16.msra.mxu0 0
    %209 = vmatpush.bf16.msra.mxu0 0
    %210 = vmatpush.bf16.msra.mxu0 %v167
    %211 = vmatmul.bf16.gmra.mxu0 %v175
    %v212 = vpop.f32.mrf.mxu0
    %v213 = vadd.f32 %v147, %v212
    %v214 = vpop.f32.mrf.mxu0
    %215 = vdwg.mxu0
    %216 = vmatpush.bf16.msra.mxu0 0
    %217 = vmatpush.bf16.msra.mxu0 0
    %218 = vmatpush.bf16.msra.mxu0 0
    %219 = vmatpush.bf16.msra.mxu0 0
    %220 = vmatpush.bf16.msra.mxu0 0
    %221 = vmatpush.bf16.msra.mxu0 0
    %222 = vmatpush.bf16.msra.mxu0 0
    %223 = vmatpush.bf16.msra.mxu0 %v168
    %224 = vmatmul.bf16.gmra.mxu0 %v175
    %v225 = vpop.f32.mrf.mxu0
    %v226 = vadd.f32 %v148, %v225
    %v227 = vpop.f32.mrf.mxu0
    %228 = vdwg.mxu0
    %v229 = vld [vmem:[%s6] sm:$0x1]
    %v230 = vld [vmem:[%s7] sm:$0x1]
    %v231 = vpack.c.bf16 %v229, %v229
    %v264 = vunpack.c.l.b16 %v111
    %v265 = vunpack.c.h.b16 %v111
    %v266 = vunpack.c.l.b16 %v112
    %v267 = vunpack.c.h.b16 %v112
    %v268 = vunpack.c.l.b16 %v113
    %v269 = vunpack.c.h.b16 %v113
    %v270 = vunpack.c.l.b16 %v114
    %v271 = vunpack.c.h.b16 %v114
    %v272 = vunpack.c.l.b16 %v115
    %v273 = vunpack.c.h.b16 %v115
    %v274 = vunpack.c.l.b16 %v116
    %v275 = vunpack.c.h.b16 %v116
    %v276 = vunpack.c.l.b16 %v117
    %v277 = vunpack.c.h.b16 %v117
    %v278 = vunpack.c.l.b16 %v118
    %v279 = vunpack.c.h.b16 %v118
    %v280 = vunpack.c.l.b16 %v119
    %v281 = vunpack.c.h.b16 %v119
    %v282 = vunpack.c.l.b16 %v120
    %v283 = vunpack.c.h.b16 %v120
    %v284 = vunpack.c.l.b16 %v121
    %v285 = vunpack.c.h.b16 %v121
    %v286 = vunpack.c.l.b16 %v122
    %v287 = vunpack.c.h.b16 %v122
    %v288 = vunpack.c.l.b16 %v123
    %v289 = vunpack.c.h.b16 %v123
    %v290 = vunpack.c.l.b16 %v124
    %v291 = vunpack.c.h.b16 %v124
    %v292 = vunpack.c.l.b16 %v125
    %v293 = vunpack.c.h.b16 %v125
    %v294 = vunpack.c.l.b16 %v126
    %v295 = vunpack.c.h.b16 %v126
    %v296 = vunpack.c.l.b16 %v127
    %v297 = vunpack.c.h.b16 %v127
    %v298 = vunpack.c.l.b16 %v128
    %v299 = vunpack.c.h.b16 %v128
    %v300 = vunpack.c.l.b16 %v129
    %v301 = vunpack.c.h.b16 %v129
    %v302 = vunpack.c.l.b16 %v130
    %v303 = vunpack.c.h.b16 %v130
    %v304 = vunpack.c.l.b16 %v131
    %v305 = vunpack.c.h.b16 %v131
    %v306 = vunpack.c.l.b16 %v132
    %v307 = vunpack.c.h.b16 %v132
    %v308 = vunpack.c.l.b16 %v133
    %v309 = vunpack.c.h.b16 %v133
    %v310 = vunpack.c.l.b16 %v134
    %v311 = vunpack.c.h.b16 %v134
    %v312 = vunpack.c.l.b16 %v135
    %v313 = vunpack.c.h.b16 %v135
    %v314 = vunpack.c.l.b16 %v136
    %v315 = vunpack.c.h.b16 %v136
    %v316 = vunpack.c.l.b16 %v137
    %v317 = vunpack.c.h.b16 %v137
    %v318 = vunpack.c.l.b16 %v138
    %v319 = vunpack.c.h.b16 %v138
    %v320 = vunpack.c.l.b16 %v139
    %v321 = vunpack.c.h.b16 %v139
    %v322 = vunpack.c.l.b16 %v140
    %v323 = vunpack.c.h.b16 %v140
    %v324 = vunpack.c.l.b16 %v141
    %v325 = vunpack.c.h.b16 %v141
    %v326 = vunpack.c.l.b16 %v142
    %v327 = vunpack.c.h.b16 %v142
    %v328 = vpack.c.b16 %v268, %v264
    %v329 = vpack.c.b16 %v269, %v265
    %v330 = vpack.c.b16 %v270, %v266
    %v331 = vpack.c.b16 %v271, %v267
    %v332 = vpack.c.b16 %v276, %v272
    %v333 = vpack.c.b16 %v277, %v273
    %v334 = vpack.c.b16 %v278, %v274
    %v335 = vpack.c.b16 %v279, %v275
    %v336 = vpack.c.b16 %v284, %v280
    %v337 = vpack.c.b16 %v285, %v281
    %v338 = vpack.c.b16 %v286, %v282
    %v339 = vpack.c.b16 %v287, %v283
    %v340 = vpack.c.b16 %v292, %v288
    %v341 = vpack.c.b16 %v293, %v289
    %v342 = vpack.c.b16 %v294, %v290
    %v343 = vpack.c.b16 %v295, %v291
    %v344 = vpack.c.b16 %v300, %v296
    %v345 = vpack.c.b16 %v301, %v297
    %v346 = vpack.c.b16 %v302, %v298
    %v347 = vpack.c.b16 %v303, %v299
    %v348 = vpack.c.b16 %v308, %v304
    %v349 = vpack.c.b16 %v309, %v305
    %v350 = vpack.c.b16 %v310, %v306
    %v351 = vpack.c.b16 %v311, %v307
    %v352 = vpack.c.b16 %v316, %v312
    %v353 = vpack.c.b16 %v317, %v313
    %v354 = vpack.c.b16 %v318, %v314
    %v355 = vpack.c.b16 %v319, %v315
    %v356 = vpack.c.b16 %v324, %v320
    %v357 = vpack.c.b16 %v325, %v321
    %v358 = vpack.c.b16 %v326, %v322
    %v359 = vpack.c.b16 %v327, %v323
    %392 = vmatpush.bf16.msra.mxu0 %v356
    %393 = vmatpush.bf16.msra.mxu0 %v352
    %394 = vmatpush.bf16.msra.mxu0 %v348
    %395 = vmatpush.bf16.msra.mxu0 %v344
    %396 = vmatpush.bf16.msra.mxu0 %v340
    %397 = vmatpush.bf16.msra.mxu0 %v336
    %398 = vmatpush.bf16.msra.mxu0 %v332
    %399 = vmatpush.bf16.msra.mxu0 %v328
    %400 = vmatmul.bf16.gmra.mxu0 %v231
    %v401 = vpop.f32.mrf.mxu0
    %v402 = vadd.f32 0.0, %v401
    %v403 = vpop.f32.mrf.mxu0
    %404 = vdwg.mxu0
    %405 = vmatpush.bf16.msra.mxu0 %v357
    %406 = vmatpush.bf16.msra.mxu0 %v353
    %407 = vmatpush.bf16.msra.mxu0 %v349
    %408 = vmatpush.bf16.msra.mxu0 %v345
    %409 = vmatpush.bf16.msra.mxu0 %v341
    %410 = vmatpush.bf16.msra.mxu0 %v337
    %411 = vmatpush.bf16.msra.mxu0 %v333
    %412 = vmatpush.bf16.msra.mxu0 %v329
    %413 = vmatmul.bf16.gmra.mxu0 %v231
    %v414 = vpop.f32.mrf.mxu0
    %v415 = vadd.f32 0.0, %v414
    %v416 = vpop.f32.mrf.mxu0
    %417 = vdwg.mxu0
    %418 = vmatpush.bf16.msra.mxu0 %v358
    %419 = vmatpush.bf16.msra.mxu0 %v354
    %420 = vmatpush.bf16.msra.mxu0 %v350
    %421 = vmatpush.bf16.msra.mxu0 %v346
    %422 = vmatpush.bf16.msra.mxu0 %v342
    %423 = vmatpush.bf16.msra.mxu0 %v338
    %424 = vmatpush.bf16.msra.mxu0 %v334
    %425 = vmatpush.bf16.msra.mxu0 %v330
    %426 = vmatmul.bf16.gmra.mxu0 %v231
    %v427 = vpop.f32.mrf.mxu0
    %v428 = vadd.f32 0.0, %v427
    %v429 = vpop.f32.mrf.mxu0
    %430 = vdwg.mxu0
    %431 = vmatpush.bf16.msra.mxu0 %v359
    %432 = vmatpush.bf16.msra.mxu0 %v355
    %433 = vmatpush.bf16.msra.mxu0 %v351
    %434 = vmatpush.bf16.msra.mxu0 %v347
    %435 = vmatpush.bf16.msra.mxu0 %v343
    %436 = vmatpush.bf16.msra.mxu0 %v339
    %437 = vmatpush.bf16.msra.mxu0 %v335
    %438 = vmatpush.bf16.msra.mxu0 %v331
    %439 = vmatmul.bf16.gmra.mxu0 %v231
    %v440 = vpop.f32.mrf.mxu0
    %v441 = vadd.f32 0.0, %v440
    %v442 = vpop.f32.mrf.mxu0
    %443 = vdwg.mxu0
    %v444 = vadd.f32 %v187, %v402
    %v445 = vadd.f32 %v200, %v415
    %v446 = vadd.f32 %v213, %v428
    %v447 = vadd.f32 %v226, %v441
    %v448 = vxor.u32 %v444, 2147483648
    %v449 = vxor.u32 %v445, 2147483648
    %v450 = vxor.u32 %v446, 2147483648
    %v451 = vmul.f32 %v448, 1.442695
    %v452 = vpow.pop %v451
    %v453 = vmul.f32 %v449, 1.442695
    %v454 = vpow.pop %v453
    %v455 = vmul.f32 %v450, 1.442695
    %v456 = vpow.pop %v455
    %v457 = vadd.f32 %v452, 1.0
    %v458 = vadd.f32 %v454, 1.0
    %v459 = vadd.f32 %v456, 1.0
    %v460 = vrcp.pop %v457
    %v461 = vmul.f32 %v457, %v460
    %v462 = vsub.f32 1.0, %v461
    %v463 = vmul.f32 %v460, %v462
    %v464 = vadd.f32 %v460, %v463
    %vm465 = vweird.f32 %v457
    %vm466 = vweird.f32 %v460
    %vm467 = vmor %vm465, %vm466
    %v468 = vsel %vm467, %v460, %v464
    %v469 = vand.u32 2147483647, %v457
    %vm470 = vcmp.eq.f32.partialorder %v469, 8.507059e+37
    %v471 = vand.u32 %v457, 2147483648
    %v472 = vor.u32 1.1754944e-38, %v471
    %v473 = vsel %vm470, %v472, %v468
    %v474 = vmul.f32 1.0, %v473
    %v475 = vrcp.pop %v458
    %v476 = vmul.f32 %v458, %v475
    %v477 = vsub.f32 1.0, %v476
    %v478 = vmul.f32 %v475, %v477
    %v479 = vadd.f32 %v475, %v478
    %vm480 = vweird.f32 %v458
    %vm481 = vweird.f32 %v475
    %vm482 = vmor %vm480, %vm481
    %v483 = vsel %vm482, %v475, %v479
    %v484 = vand.u32 2147483647, %v458
    %vm485 = vcmp.eq.f32.partialorder %v484, 8.507059e+37
    %v486 = vand.u32 %v458, 2147483648
    %v487 = vor.u32 1.1754944e-38, %v486
    %v488 = vsel %vm485, %v487, %v483
    %v489 = vmul.f32 1.0, %v488
    %v490 = vrcp.pop %v459
    %v491 = vmul.f32 %v459, %v490
    %v492 = vsub.f32 1.0, %v491
    %v493 = vmul.f32 %v490, %v492
    %v494 = vadd.f32 %v490, %v493
    %vm495 = vweird.f32 %v459
    %vm496 = vweird.f32 %v490
    %vm497 = vmor %vm495, %vm496
    %v498 = vsel %vm497, %v490, %v494
    %v499 = vand.u32 2147483647, %v459
    %vm500 = vcmp.eq.f32.partialorder %v499, 8.507059e+37
    %v501 = vand.u32 %v459, 2147483648
    %v502 = vor.u32 1.1754944e-38, %v501
    %v503 = vsel %vm500, %v502, %v498
    %v504 = vmul.f32 1.0, %v503
    %v505 = vtanh.pop %v447
    %v506 = vmul.f32 %v489, %v230
    %v507 = vmul.f32 %v474, %v505
    %v508 = vadd.f32 %v506, %v507
    %v509 = vtanh.pop %v508
    %v510 = vmul.f32 %v504, %v509
    %511 = vst [vmem:[#allocation2] sm:$0x1] %v510
    %v512 = vpack.c.bf16 %v510, %v510
    %513 = vmatpush.bf16.msra.mxu0 %v356
    %514 = vmatpush.bf16.msra.mxu0 %v352
    %515 = vmatpush.bf16.msra.mxu0 %v348
    %516 = vmatpush.bf16.msra.mxu0 %v344
    %517 = vmatpush.bf16.msra.mxu0 %v340
    %518 = vmatpush.bf16.msra.mxu0 %v336
    %519 = vmatpush.bf16.msra.mxu0 %v332
    %520 = vmatpush.bf16.msra.mxu0 %v328
    %521 = vmatmul.bf16.gmra.mxu0 %v512
    %v522 = vpop.f32.mrf.mxu0
    %v523 = vadd.f32 0.0, %v522
    %v524 = vpop.f32.mrf.mxu0
    %525 = vdwg.mxu0
    %526 = vmatpush.bf16.msra.mxu0 %v357
    %527 = vmatpush.bf16.msra.mxu0 %v353
    %528 = vmatpush.bf16.msra.mxu0 %v349
    %529 = vmatpush.bf16.msra.mxu0 %v345
    %530 = vmatpush.bf16.msra.mxu0 %v341
    %531 = vmatpush.bf16.msra.mxu0 %v337
    %532 = vmatpush.bf16.msra.mxu0 %v333
    %533 = vmatpush.bf16.msra.mxu0 %v329
    %534 = vmatmul.bf16.gmra.mxu0 %v512
    %v535 = vpop.f32.mrf.mxu0
    %v536 = vadd.f32 0.0, %v535
    %v537 = vpop.f32.mrf.mxu0
    %538 = vdwg.mxu0
    %539 = vmatpush.bf16.msra.mxu0 %v358
    %540 = vmatpush.bf16.msra.mxu0 %v354
    %541 = vmatpush.bf16.msra.mxu0 %v350
    %542 = vmatpush.bf16.msra.mxu0 %v346
    %543 = vmatpush.bf16.msra.mxu0 %v342
    %544 = vmatpush.bf16.msra.mxu0 %v338
    %545 = vmatpush.bf16.msra.mxu0 %v334
    %546 = vmatpush.bf16.msra.mxu0 %v330
    %547 = vmatmul.bf16.gmra.mxu0 %v512
    %v548 = vpop.f32.mrf.mxu0
    %v549 = vadd.f32 0.0, %v548
    %v550 = vpop.f32.mrf.mxu0
    %551 = vdwg.mxu0
    %552 = vmatpush.bf16.msra.mxu0 %v359
    %553 = vmatpush.bf16.msra.mxu0 %v355
    %554 = vmatpush.bf16.msra.mxu0 %v351
    %555 = vmatpush.bf16.msra.mxu0 %v347
    %556 = vmatpush.bf16.msra.mxu0 %v343
    %557 = vmatpush.bf16.msra.mxu0 %v339
    %558 = vmatpush.bf16.msra.mxu0 %v335
    %559 = vmatpush.bf16.msra.mxu0 %v331
    %560 = vmatmul.bf16.gmra.mxu0 %v512
    %v561 = vpop.f32.mrf.mxu0
    %v562 = vadd.f32 0.0, %v561
    %v563 = vpop.f32.mrf.mxu0
    %564 = vdwg.mxu0
    %v569 = vrot.slane %v523, 7
    %v570 = vrot.slane %v536, 7
    %v571 = vrot.slane %v549, 7
    %v572 = vrot.slane %v562, 7
    %v577 = vadd.f32 %v187, %v569
    %v578 = vadd.f32 %v200, %v570
    %v579 = vadd.f32 %v213, %v571
    %v580 = vadd.f32 %v226, %v572
    %v581 = vxor.u32 %v577, 2147483648
    %v582 = vxor.u32 %v578, 2147483648
    %v583 = vxor.u32 %v579, 2147483648
    %v584 = vmul.f32 %v581, 1.442695
    %v585 = vpow.pop %v584
    %v586 = vmul.f32 %v582, 1.442695
    %v587 = vpow.pop %v586
    %v588 = vmul.f32 %v583, 1.442695
    %v589 = vpow.pop %v588
    %v590 = vadd.f32 %v585, 1.0
    %v591 = vadd.f32 %v587, 1.0
    %v592 = vadd.f32 %v589, 1.0
    %v593 = vrcp.pop %v590
    %v594 = vmul.f32 %v590, %v593
    %v595 = vsub.f32 1.0, %v594
    %v596 = vmul.f32 %v593, %v595
    %v597 = vadd.f32 %v593, %v596
    %vm598 = vweird.f32 %v590
    %vm599 = vweird.f32 %v593
    %vm600 = vmor %vm598, %vm599
    %v601 = vsel %vm600, %v593, %v597
    %v602 = vand.u32 2147483647, %v590
    %vm603 = vcmp.eq.f32.partialorder %v602, 8.507059e+37
    %v604 = vand.u32 %v590, 2147483648
    %v605 = vor.u32 1.1754944e-38, %v604
    %v606 = vsel %vm603, %v605, %v601
    %v607 = vmul.f32 1.0, %v606
    %v608 = vrcp.pop %v591
    %v609 = vmul.f32 %v591, %v608
    %v610 = vsub.f32 1.0, %v609
    %v611 = vmul.f32 %v608, %v610
    %v612 = vadd.f32 %v608, %v611
    %vm613 = vweird.f32 %v591
    %vm614 = vweird.f32 %v608
    %vm615 = vmor %vm613, %vm614
    %v616 = vsel %vm615, %v608, %v612
    %v617 = vand.u32 2147483647, %v591
    %vm618 = vcmp.eq.f32.partialorder %v617, 8.507059e+37
    %v619 = vand.u32 %v591, 2147483648
    %v620 = vor.u32 1.1754944e-38, %v619
    %v621 = vsel %vm618, %v620, %v616
    %v622 = vmul.f32 1.0, %v621
    %v623 = vrcp.pop %v592
    %v624 = vmul.f32 %v592, %v623
    %v625 = vsub.f32 1.0, %v624
    %v626 = vmul.f32 %v623, %v625
    %v627 = vadd.f32 %v623, %v626
    %vm628 = vweird.f32 %v592
    %vm629 = vweird.f32 %v623
    %vm630 = vmor %vm628, %vm629
    %v631 = vsel %vm630, %v623, %v627
    %v632 = vand.u32 2147483647, %v592
    %vm633 = vcmp.eq.f32.partialorder %v632, 8.507059e+37
    %v634 = vand.u32 %v592, 2147483648
    %v635 = vor.u32 1.1754944e-38, %v634
    %v636 = vsel %vm633, %v635, %v631
    %v637 = vmul.f32 1.0, %v636
    %v638 = vtanh.pop %v580
    %v640 = vrot.slane %v508, 7
    %v642 = vmul.f32 %v622, %v640
    %v643 = vmul.f32 %v607, %v638
    %v644 = vadd.f32 %v642, %v643
    %v645 = vtanh.pop %v644
    %v646 = vmul.f32 %v637, %v645
    %647 = vst [vmem:[#allocation2] sm:$0x2] %v646
    %v648 = vpack.c.bf16 %v646, %v646
    %v650 = vshrl.u32 %v648, 16
    %653 = vmatpush.bf16.msra.mxu0 %v356
    %654 = vmatpush.bf16.msra.mxu0 %v352
    %655 = vmatpush.bf16.msra.mxu0 %v348
    %656 = vmatpush.bf16.msra.mxu0 %v344
    %657 = vmatpush.bf16.msra.mxu0 %v340
    %658 = vmatpush.bf16.msra.mxu0 %v336
    %659 = vmatpush.bf16.msra.mxu0 %v332
    %660 = vmatpush.bf16.msra.mxu0 %v328
    %661 = vmatmul.bf16.gmra.mxu0 %v650
    %v662 = vpop.f32.mrf.mxu0
    %v663 = vadd.f32 0.0, %v662
    %v664 = vpop.f32.mrf.mxu0
    %665 = vdwg.mxu0
    %666 = vmatpush.bf16.msra.mxu0 %v357
    %667 = vmatpush.bf16.msra.mxu0 %v353
    %668 = vmatpush.bf16.msra.mxu0 %v349
    %669 = vmatpush.bf16.msra.mxu0 %v345
    %670 = vmatpush.bf16.msra.mxu0 %v341
    %671 = vmatpush.bf16.msra.mxu0 %v337
    %672 = vmatpush.bf16.msra.mxu0 %v333
    %673 = vmatpush.bf16.msra.mxu0 %v329
    %674 = vmatmul.bf16.gmra.mxu0 %v650
    %v675 = vpop.f32.mrf.mxu0
    %v676 = vadd.f32 0.0, %v675
    %v677 = vpop.f32.mrf.mxu0
    %678 = vdwg.mxu0
    %679 = vmatpush.bf16.msra.mxu0 %v358
    %680 = vmatpush.bf16.msra.mxu0 %v354
    %681 = vmatpush.bf16.msra.mxu0 %v350
    %682 = vmatpush.bf16.msra.mxu0 %v346
    %683 = vmatpush.bf16.msra.mxu0 %v342
    %684 = vmatpush.bf16.msra.mxu0 %v338
    %685 = vmatpush.bf16.msra.mxu0 %v334
    %686 = vmatpush.bf16.msra.mxu0 %v330
    %687 = vmatmul.bf16.gmra.mxu0 %v650
    %v688 = vpop.f32.mrf.mxu0
    %v689 = vadd.f32 0.0, %v688
    %v690 = vpop.f32.mrf.mxu0
    %691 = vdwg.mxu0
    %692 = vmatpush.bf16.msra.mxu0 %v359
    %693 = vmatpush.bf16.msra.mxu0 %v355
    %694 = vmatpush.bf16.msra.mxu0 %v351
    %695 = vmatpush.bf16.msra.mxu0 %v347
    %696 = vmatpush.bf16.msra.mxu0 %v343
    %697 = vmatpush.bf16.msra.mxu0 %v339
    %698 = vmatpush.bf16.msra.mxu0 %v335
    %699 = vmatpush.bf16.msra.mxu0 %v331
    %700 = vmatmul.bf16.gmra.mxu0 %v650
    %v701 = vpop.f32.mrf.mxu0
    %v702 = vadd.f32 0.0, %v701
    %v703 = vpop.f32.mrf.mxu0
    %704 = vdwg.mxu0
    %v709 = vrot.slane %v663, 6
    %v710 = vrot.slane %v676, 6
    %v711 = vrot.slane %v689, 6
    %v712 = vrot.slane %v702, 6
    %v717 = vadd.f32 %v187, %v709
    %v718 = vadd.f32 %v200, %v710
    %v719 = vadd.f32 %v213, %v711
    %v720 = vadd.f32 %v226, %v712
    %v721 = vxor.u32 %v717, 2147483648
    %v722 = vxor.u32 %v718, 2147483648
    %v723 = vxor.u32 %v719, 2147483648
    %v724 = vmul.f32 %v721, 1.442695
    %v725 = vpow.pop %v724
    %v726 = vmul.f32 %v722, 1.442695
    %v727 = vpow.pop %v726
    %v728 = vmul.f32 %v723, 1.442695
    %v729 = vpow.pop %v728
    %v730 = vadd.f32 %v725, 1.0
    %v731 = vadd.f32 %v727, 1.0
    %v732 = vadd.f32 %v729, 1.0
    %v733 = vrcp.pop %v730
    %v734 = vmul.f32 %v730, %v733
    %v735 = vsub.f32 1.0, %v734
    %v736 = vmul.f32 %v733, %v735
    %v737 = vadd.f32 %v733, %v736
    %vm738 = vweird.f32 %v730
    %vm739 = vweird.f32 %v733
    %vm740 = vmor %vm738, %vm739
    %v741 = vsel %vm740, %v733, %v737
    %v742 = vand.u32 2147483647, %v730
    %vm743 = vcmp.eq.f32.partialorder %v742, 8.507059e+37
    %v744 = vand.u32 %v730, 2147483648
    %v745 = vor.u32 1.1754944e-38, %v744
    %v746 = vsel %vm743, %v745, %v741
    %v747 = vmul.f32 1.0, %v746
    %v748 = vrcp.pop %v731
    %v749 = vmul.f32 %v731, %v748
    %v750 = vsub.f32 1.0, %v749
    %v751 = vmul.f32 %v748, %v750
    %v752 = vadd.f32 %v748, %v751
    %vm753 = vweird.f32 %v731
    %vm754 = vweird.f32 %v748
    %vm755 = vmor %vm753, %vm754
    %v756 = vsel %vm755, %v748, %v752
    %v757 = vand.u32 2147483647, %v731
    %vm758 = vcmp.eq.f32.partialorder %v757, 8.507059e+37
    %v759 = vand.u32 %v731, 2147483648
    %v760 = vor.u32 1.1754944e-38, %v759
    %v761 = vsel %vm758, %v760, %v756
    %v762 = vmul.f32 1.0, %v761
    %v763 = vrcp.pop %v732
    %v764 = vmul.f32 %v732, %v763
    %v765 = vsub.f32 1.0, %v764
    %v766 = vmul.f32 %v763, %v765
    %v767 = vadd.f32 %v763, %v766
    %vm768 = vweird.f32 %v732
    %vm769 = vweird.f32 %v763
    %vm770 = vmor %vm768, %vm769
    %v771 = vsel %vm770, %v763, %v767
    %v772 = vand.u32 2147483647, %v732
    %vm773 = vcmp.eq.f32.partialorder %v772, 8.507059e+37
    %v774 = vand.u32 %v732, 2147483648
    %v775 = vor.u32 1.1754944e-38, %v774
    %v776 = vsel %vm773, %v775, %v771
    %v777 = vmul.f32 1.0, %v776
    %v778 = vtanh.pop %v720
    %v780 = vrot.slane %v644, 7
    %v782 = vmul.f32 %v762, %v780
    %v783 = vmul.f32 %v747, %v778
    %v784 = vadd.f32 %v782, %v783
    %v785 = vtanh.pop %v784
    %v786 = vmul.f32 %v777, %v785
    %787 = vst [vmem:[#allocation2] sm:$0x4] %v786
    %v788 = vpack.c.bf16 %v786, %v786
    %v790 = vrot.slane %v788, 1
    %792 = vmatpush.bf16.msra.mxu0 %v356
    %793 = vmatpush.bf16.msra.mxu0 %v352
    %794 = vmatpush.bf16.msra.mxu0 %v348
    %795 = vmatpush.bf16.msra.mxu0 %v344
    %796 = vmatpush.bf16.msra.mxu0 %v340
    %797 = vmatpush.bf16.msra.mxu0 %v336
    %798 = vmatpush.bf16.msra.mxu0 %v332
    %799 = vmatpush.bf16.msra.mxu0 %v328
    %800 = vmatmul.bf16.gmra.mxu0 %v790
    %v801 = vpop.f32.mrf.mxu0
    %v802 = vadd.f32 0.0, %v801
    %v803 = vpop.f32.mrf.mxu0
    %804 = vdwg.mxu0
    %805 = vmatpush.bf16.msra.mxu0 %v357
    %806 = vmatpush.bf16.msra.mxu0 %v353
    %807 = vmatpush.bf16.msra.mxu0 %v349
    %808 = vmatpush.bf16.msra.mxu0 %v345
    %809 = vmatpush.bf16.msra.mxu0 %v341
    %810 = vmatpush.bf16.msra.mxu0 %v337
    %811 = vmatpush.bf16.msra.mxu0 %v333
    %812 = vmatpush.bf16.msra.mxu0 %v329
    %813 = vmatmul.bf16.gmra.mxu0 %v790
    %v814 = vpop.f32.mrf.mxu0
    %v815 = vadd.f32 0.0, %v814
    %v816 = vpop.f32.mrf.mxu0
    %817 = vdwg.mxu0
    %818 = vmatpush.bf16.msra.mxu0 %v358
    %819 = vmatpush.bf16.msra.mxu0 %v354
    %820 = vmatpush.bf16.msra.mxu0 %v350
    %821 = vmatpush.bf16.msra.mxu0 %v346
    %822 = vmatpush.bf16.msra.mxu0 %v342
    %823 = vmatpush.bf16.msra.mxu0 %v338
    %824 = vmatpush.bf16.msra.mxu0 %v334
    %825 = vmatpush.bf16.msra.mxu0 %v330
    %826 = vmatmul.bf16.gmra.mxu0 %v790
    %v827 = vpop.f32.mrf.mxu0
    %v828 = vadd.f32 0.0, %v827
    %v829 = vpop.f32.mrf.mxu0
    %830 = vdwg.mxu0
    %831 = vmatpush.bf16.msra.mxu0 %v359
    %832 = vmatpush.bf16.msra.mxu0 %v355
    %833 = vmatpush.bf16.msra.mxu0 %v351
    %834 = vmatpush.bf16.msra.mxu0 %v347
    %835 = vmatpush.bf16.msra.mxu0 %v343
    %836 = vmatpush.bf16.msra.mxu0 %v339
    %837 = vmatpush.bf16.msra.mxu0 %v335
    %838 = vmatpush.bf16.msra.mxu0 %v331
    %839 = vmatmul.bf16.gmra.mxu0 %v790
    %v840 = vpop.f32.mrf.mxu0
    %v841 = vadd.f32 0.0, %v840
    %v842 = vpop.f32.mrf.mxu0
    %843 = vdwg.mxu0
    %v848 = vrot.slane %v802, 5
    %v849 = vrot.slane %v815, 5
    %v850 = vrot.slane %v828, 5
    %v851 = vrot.slane %v841, 5
    %v856 = vadd.f32 %v187, %v848
    %v857 = vadd.f32 %v200, %v849
    %v858 = vadd.f32 %v213, %v850
    %v859 = vadd.f32 %v226, %v851
    %v860 = vxor.u32 %v856, 2147483648
    %v861 = vxor.u32 %v857, 2147483648
    %v862 = vxor.u32 %v858, 2147483648
    %v863 = vmul.f32 %v860, 1.442695
    %v864 = vpow.pop %v863
    %v865 = vmul.f32 %v861, 1.442695
    %v866 = vpow.pop %v865
    %v867 = vmul.f32 %v862, 1.442695
    %v868 = vpow.pop %v867
    %v869 = vadd.f32 %v864, 1.0
    %v870 = vadd.f32 %v866, 1.0
    %v871 = vadd.f32 %v868, 1.0
    %v872 = vrcp.pop %v869
    %v873 = vmul.f32 %v869, %v872
    %v874 = vsub.f32 1.0, %v873
    %v875 = vmul.f32 %v872, %v874
    %v876 = vadd.f32 %v872, %v875
    %vm877 = vweird.f32 %v869
    %vm878 = vweird.f32 %v872
    %vm879 = vmor %vm877, %vm878
    %v880 = vsel %vm879, %v872, %v876
    %v881 = vand.u32 2147483647, %v869
    %vm882 = vcmp.eq.f32.partialorder %v881, 8.507059e+37
    %v883 = vand.u32 %v869, 2147483648
    %v884 = vor.u32 1.1754944e-38, %v883
    %v885 = vsel %vm882, %v884, %v880
    %v886 = vmul.f32 1.0, %v885
    %v887 = vrcp.pop %v870
    %v888 = vmul.f32 %v870, %v887
    %v889 = vsub.f32 1.0, %v888
    %v890 = vmul.f32 %v887, %v889
    %v891 = vadd.f32 %v887, %v890
    %vm892 = vweird.f32 %v870
    %vm893 = vweird.f32 %v887
    %vm894 = vmor %vm892, %vm893
    %v895 = vsel %vm894, %v887, %v891
    %v896 = vand.u32 2147483647, %v870
    %vm897 = vcmp.eq.f32.partialorder %v896, 8.507059e+37
    %v898 = vand.u32 %v870, 2147483648
    %v899 = vor.u32 1.1754944e-38, %v898
    %v900 = vsel %vm897, %v899, %v895
    %v901 = vmul.f32 1.0, %v900
    %v902 = vrcp.pop %v871
    %v903 = vmul.f32 %v871, %v902
    %v904 = vsub.f32 1.0, %v903
    %v905 = vmul.f32 %v902, %v904
    %v906 = vadd.f32 %v902, %v905
    %vm907 = vweird.f32 %v871
    %vm908 = vweird.f32 %v902
    %vm909 = vmor %vm907, %vm908
    %v910 = vsel %vm909, %v902, %v906
    %v911 = vand.u32 2147483647, %v871
    %vm912 = vcmp.eq.f32.partialorder %v911, 8.507059e+37
    %v913 = vand.u32 %v871, 2147483648
    %v914 = vor.u32 1.1754944e-38, %v913
    %v915 = vsel %vm912, %v914, %v910
    %v916 = vmul.f32 1.0, %v915
    %v917 = vtanh.pop %v859
    %v919 = vrot.slane %v784, 7
    %v921 = vmul.f32 %v901, %v919
    %v922 = vmul.f32 %v886, %v917
    %v923 = vadd.f32 %v921, %v922
    %v924 = vtanh.pop %v923
    %v925 = vmul.f32 %v916, %v924
    %926 = vst [vmem:[#allocation2] sm:$0x8] %v925
    %v927 = vpack.c.bf16 %v925, %v925
    %v929 = vshrl.u32 %v927, 16
    %v931 = vrot.slane %v929, 1
    %933 = vmatpush.bf16.msra.mxu0 %v356
    %934 = vmatpush.bf16.msra.mxu0 %v352
    %935 = vmatpush.bf16.msra.mxu0 %v348
    %936 = vmatpush.bf16.msra.mxu0 %v344
    %937 = vmatpush.bf16.msra.mxu0 %v340
    %938 = vmatpush.bf16.msra.mxu0 %v336
    %939 = vmatpush.bf16.msra.mxu0 %v332
    %940 = vmatpush.bf16.msra.mxu0 %v328
    %941 = vmatmul.bf16.gmra.mxu0 %v931
    %v942 = vpop.f32.mrf.mxu0
    %v943 = vadd.f32 0.0, %v942
    %v944 = vpop.f32.mrf.mxu0
    %945 = vdwg.mxu0
    %946 = vmatpush.bf16.msra.mxu0 %v357
    %947 = vmatpush.bf16.msra.mxu0 %v353
    %948 = vmatpush.bf16.msra.mxu0 %v349
    %949 = vmatpush.bf16.msra.mxu0 %v345
    %950 = vmatpush.bf16.msra.mxu0 %v341
    %951 = vmatpush.bf16.msra.mxu0 %v337
    %952 = vmatpush.bf16.msra.mxu0 %v333
    %953 = vmatpush.bf16.msra.mxu0 %v329
    %954 = vmatmul.bf16.gmra.mxu0 %v931
    %v955 = vpop.f32.mrf.mxu0
    %v956 = vadd.f32 0.0, %v955
    %v957 = vpop.f32.mrf.mxu0
    %958 = vdwg.mxu0
    %959 = vmatpush.bf16.msra.mxu0 %v358
    %960 = vmatpush.bf16.msra.mxu0 %v354
    %961 = vmatpush.bf16.msra.mxu0 %v350
    %962 = vmatpush.bf16.msra.mxu0 %v346
    %963 = vmatpush.bf16.msra.mxu0 %v342
    %964 = vmatpush.bf16.msra.mxu0 %v338
    %965 = vmatpush.bf16.msra.mxu0 %v334
    %966 = vmatpush.bf16.msra.mxu0 %v330
    %967 = vmatmul.bf16.gmra.mxu0 %v931
    %v968 = vpop.f32.mrf.mxu0
    %v969 = vadd.f32 0.0, %v968
    %v970 = vpop.f32.mrf.mxu0
    %971 = vdwg.mxu0
    %972 = vmatpush.bf16.msra.mxu0 %v359
    %973 = vmatpush.bf16.msra.mxu0 %v355
    %974 = vmatpush.bf16.msra.mxu0 %v351
    %975 = vmatpush.bf16.msra.mxu0 %v347
    %976 = vmatpush.bf16.msra.mxu0 %v343
    %977 = vmatpush.bf16.msra.mxu0 %v339
    %978 = vmatpush.bf16.msra.mxu0 %v335
    %979 = vmatpush.bf16.msra.mxu0 %v331
    %980 = vmatmul.bf16.gmra.mxu0 %v931
    %v981 = vpop.f32.mrf.mxu0
    %v982 = vadd.f32 0.0, %v981
    %v983 = vpop.f32.mrf.mxu0
    %984 = vdwg.mxu0
    %v989 = vrot.slane %v943, 4
    %v990 = vrot.slane %v956, 4
    %v991 = vrot.slane %v969, 4
    %v992 = vrot.slane %v982, 4
    %v997 = vadd.f32 %v187, %v989
    %v998 = vadd.f32 %v200, %v990
    %v999 = vadd.f32 %v213, %v991
    %v1000 = vadd.f32 %v226, %v992
    %v1001 = vxor.u32 %v997, 2147483648
    %v1002 = vxor.u32 %v998, 2147483648
    %v1003 = vxor.u32 %v999, 2147483648
    %v1004 = vmul.f32 %v1001, 1.442695
    %v1005 = vpow.pop %v1004
    %v1006 = vmul.f32 %v1002, 1.442695
    %v1007 = vpow.pop %v1006
    %v1008 = vmul.f32 %v1003, 1.442695
    %v1009 = vpow.pop %v1008
    %v1010 = vadd.f32 %v1005, 1.0
    %v1011 = vadd.f32 %v1007, 1.0
    %v1012 = vadd.f32 %v1009, 1.0
    %v1013 = vrcp.pop %v1010
    %v1014 = vmul.f32 %v1010, %v1013
    %v1015 = vsub.f32 1.0, %v1014
    %v1016 = vmul.f32 %v1013, %v1015
    %v1017 = vadd.f32 %v1013, %v1016
    %vm1018 = vweird.f32 %v1010
    %vm1019 = vweird.f32 %v1013
    %vm1020 = vmor %vm1018, %vm1019
    %v1021 = vsel %vm1020, %v1013, %v1017
    %v1022 = vand.u32 2147483647, %v1010
    %vm1023 = vcmp.eq.f32.partialorder %v1022, 8.507059e+37
    %v1024 = vand.u32 %v1010, 2147483648
    %v1025 = vor.u32 1.1754944e-38, %v1024
    %v1026 = vsel %vm1023, %v1025, %v1021
    %v1027 = vmul.f32 1.0, %v1026
    %v1028 = vrcp.pop %v1011
    %v1029 = vmul.f32 %v1011, %v1028
    %v1030 = vsub.f32 1.0, %v1029
    %v1031 = vmul.f32 %v1028, %v1030
    %v1032 = vadd.f32 %v1028, %v1031
    %vm1033 = vweird.f32 %v1011
    %vm1034 = vweird.f32 %v1028
    %vm1035 = vmor %vm1033, %vm1034
    %v1036 = vsel %vm1035, %v1028, %v1032
    %v1037 = vand.u32 2147483647, %v1011
    %vm1038 = vcmp.eq.f32.partialorder %v1037, 8.507059e+37
    %v1039 = vand.u32 %v1011, 2147483648
    %v1040 = vor.u32 1.1754944e-38, %v1039
    %v1041 = vsel %vm1038, %v1040, %v1036
    %v1042 = vmul.f32 1.0, %v1041
    %v1043 = vrcp.pop %v1012
    %v1044 = vmul.f32 %v1012, %v1043
    %v1045 = vsub.f32 1.0, %v1044
    %v1046 = vmul.f32 %v1043, %v1045
    %v1047 = vadd.f32 %v1043, %v1046
    %vm1048 = vweird.f32 %v1012
    %vm1049 = vweird.f32 %v1043
    %vm1050 = vmor %vm1048, %vm1049
    %v1051 = vsel %vm1050, %v1043, %v1047
    %v1052 = vand.u32 2147483647, %v1012
    %vm1053 = vcmp.eq.f32.partialorder %v1052, 8.507059e+37
    %v1054 = vand.u32 %v1012, 2147483648
    %v1055 = vor.u32 1.1754944e-38, %v1054
    %v1056 = vsel %vm1053, %v1055, %v1051
    %v1057 = vmul.f32 1.0, %v1056
    %v1058 = vtanh.pop %v1000
    %v1060 = vrot.slane %v923, 7
    %v1062 = vmul.f32 %v1042, %v1060
    %v1063 = vmul.f32 %v1027, %v1058
    %v1064 = vadd.f32 %v1062, %v1063
    %v1065 = vtanh.pop %v1064
    %v1066 = vmul.f32 %v1057, %v1065
    %1067 = vst [vmem:[#allocation2] sm:$0x10] %v1066
    %v1068 = vpack.c.bf16 %v1066, %v1066
    %v1070 = vrot.slane %v1068, 2
    %1072 = vmatpush.bf16.msra.mxu0 %v356
    %1073 = vmatpush.bf16.msra.mxu0 %v352
    %1074 = vmatpush.bf16.msra.mxu0 %v348
    %1075 = vmatpush.bf16.msra.mxu0 %v344
    %1076 = vmatpush.bf16.msra.mxu0 %v340
    %1077 = vmatpush.bf16.msra.mxu0 %v336
    %1078 = vmatpush.bf16.msra.mxu0 %v332
    %1079 = vmatpush.bf16.msra.mxu0 %v328
    %1080 = vmatmul.bf16.gmra.mxu0 %v1070
    %v1081 = vpop.f32.mrf.mxu0
    %v1082 = vadd.f32 0.0, %v1081
    %v1083 = vpop.f32.mrf.mxu0
    %1084 = vdwg.mxu0
    %1085 = vmatpush.bf16.msra.mxu0 %v357
    %1086 = vmatpush.bf16.msra.mxu0 %v353
    %1087 = vmatpush.bf16.msra.mxu0 %v349
    %1088 = vmatpush.bf16.msra.mxu0 %v345
    %1089 = vmatpush.bf16.msra.mxu0 %v341
    %1090 = vmatpush.bf16.msra.mxu0 %v337
    %1091 = vmatpush.bf16.msra.mxu0 %v333
    %1092 = vmatpush.bf16.msra.mxu0 %v329
    %1093 = vmatmul.bf16.gmra.mxu0 %v1070
    %v1094 = vpop.f32.mrf.mxu0
    %v1095 = vadd.f32 0.0, %v1094
    %v1096 = vpop.f32.mrf.mxu0
    %1097 = vdwg.mxu0
    %1098 = vmatpush.bf16.msra.mxu0 %v358
    %1099 = vmatpush.bf16.msra.mxu0 %v354
    %1100 = vmatpush.bf16.msra.mxu0 %v350
    %1101 = vmatpush.bf16.msra.mxu0 %v346
    %1102 = vmatpush.bf16.msra.mxu0 %v342
    %1103 = vmatpush.bf16.msra.mxu0 %v338
    %1104 = vmatpush.bf16.msra.mxu0 %v334
    %1105 = vmatpush.bf16.msra.mxu0 %v330
    %1106 = vmatmul.bf16.gmra.mxu0 %v1070
    %v1107 = vpop.f32.mrf.mxu0
    %v1108 = vadd.f32 0.0, %v1107
    %v1109 = vpop.f32.mrf.mxu0
    %1110 = vdwg.mxu0
    %1111 = vmatpush.bf16.msra.mxu0 %v359
    %1112 = vmatpush.bf16.msra.mxu0 %v355
    %1113 = vmatpush.bf16.msra.mxu0 %v351
    %1114 = vmatpush.bf16.msra.mxu0 %v347
    %1115 = vmatpush.bf16.msra.mxu0 %v343
    %1116 = vmatpush.bf16.msra.mxu0 %v339
    %1117 = vmatpush.bf16.msra.mxu0 %v335
    %1118 = vmatpush.bf16.msra.mxu0 %v331
    %1119 = vmatmul.bf16.gmra.mxu0 %v1070
    %v1120 = vpop.f32.mrf.mxu0
    %v1121 = vadd.f32 0.0, %v1120
    %v1122 = vpop.f32.mrf.mxu0
    %1123 = vdwg.mxu0
    %v1128 = vrot.slane %v1082, 3
    %v1129 = vrot.slane %v1095, 3
    %v1130 = vrot.slane %v1108, 3
    %v1131 = vrot.slane %v1121, 3
    %v1136 = vadd.f32 %v187, %v1128
    %v1137 = vadd.f32 %v200, %v1129
    %v1138 = vadd.f32 %v213, %v1130
    %v1139 = vadd.f32 %v226, %v1131
    %v1140 = vxor.u32 %v1136, 2147483648
    %v1141 = vxor.u32 %v1137, 2147483648
    %v1142 = vxor.u32 %v1138, 2147483648
    %v1143 = vmul.f32 %v1140, 1.442695
    %v1144 = vpow.pop %v1143
    %v1145 = vmul.f32 %v1141, 1.442695
    %v1146 = vpow.pop %v1145
    %v1147 = vmul.f32 %v1142, 1.442695
    %v1148 = vpow.pop %v1147
    %v1149 = vadd.f32 %v1144, 1.0
    %v1150 = vadd.f32 %v1146, 1.0
    %v1151 = vadd.f32 %v1148, 1.0
    %v1152 = vrcp.pop %v1149
    %v1153 = vmul.f32 %v1149, %v1152
    %v1154 = vsub.f32 1.0, %v1153
    %v1155 = vmul.f32 %v1152, %v1154
    %v1156 = vadd.f32 %v1152, %v1155
    %vm1157 = vweird.f32 %v1149
    %vm1158 = vweird.f32 %v1152
    %vm1159 = vmor %vm1157, %vm1158
    %v1160 = vsel %vm1159, %v1152, %v1156
    %v1161 = vand.u32 2147483647, %v1149
    %vm1162 = vcmp.eq.f32.partialorder %v1161, 8.507059e+37
    %v1163 = vand.u32 %v1149, 2147483648
    %v1164 = vor.u32 1.1754944e-38, %v1163
    %v1165 = vsel %vm1162, %v1164, %v1160
    %v1166 = vmul.f32 1.0, %v1165
    %v1167 = vrcp.pop %v1150
    %v1168 = vmul.f32 %v1150, %v1167
    %v1169 = vsub.f32 1.0, %v1168
    %v1170 = vmul.f32 %v1167, %v1169
    %v1171 = vadd.f32 %v1167, %v1170
    %vm1172 = vweird.f32 %v1150
    %vm1173 = vweird.f32 %v1167
    %vm1174 = vmor %vm1172, %vm1173
    %v1175 = vsel %vm1174, %v1167, %v1171
    %v1176 = vand.u32 2147483647, %v1150
    %vm1177 = vcmp.eq.f32.partialorder %v1176, 8.507059e+37
    %v1178 = vand.u32 %v1150, 2147483648
    %v1179 = vor.u32 1.1754944e-38, %v1178
    %v1180 = vsel %vm1177, %v1179, %v1175
    %v1181 = vmul.f32 1.0, %v1180
    %v1182 = vrcp.pop %v1151
    %v1183 = vmul.f32 %v1151, %v1182
    %v1184 = vsub.f32 1.0, %v1183
    %v1185 = vmul.f32 %v1182, %v1184
    %v1186 = vadd.f32 %v1182, %v1185
    %vm1187 = vweird.f32 %v1151
    %vm1188 = vweird.f32 %v1182
    %vm1189 = vmor %vm1187, %vm1188
    %v1190 = vsel %vm1189, %v1182, %v1186
    %v1191 = vand.u32 2147483647, %v1151
    %vm1192 = vcmp.eq.f32.partialorder %v1191, 8.507059e+37
    %v1193 = vand.u32 %v1151, 2147483648
    %v1194 = vor.u32 1.1754944e-38, %v1193
    %v1195 = vsel %vm1192, %v1194, %v1190
    %v1196 = vmul.f32 1.0, %v1195
    %v1197 = vtanh.pop %v1139
    %v1199 = vrot.slane %v1064, 7
    %v1201 = vmul.f32 %v1181, %v1199
    %v1202 = vmul.f32 %v1166, %v1197
    %v1203 = vadd.f32 %v1201, %v1202
    %v1204 = vtanh.pop %v1203
    %v1205 = vmul.f32 %v1196, %v1204
    %1206 = vst [vmem:[#allocation2] sm:$0x20] %v1205
    %v1207 = vpack.c.bf16 %v1205, %v1205
    %v1209 = vshrl.u32 %v1207, 16
    %v1211 = vrot.slane %v1209, 2
    %1213 = vmatpush.bf16.msra.mxu0 %v356
    %1214 = vmatpush.bf16.msra.mxu0 %v352
    %1215 = vmatpush.bf16.msra.mxu0 %v348
    %1216 = vmatpush.bf16.msra.mxu0 %v344
    %1217 = vmatpush.bf16.msra.mxu0 %v340
    %1218 = vmatpush.bf16.msra.mxu0 %v336
    %1219 = vmatpush.bf16.msra.mxu0 %v332
    %1220 = vmatpush.bf16.msra.mxu0 %v328
    %1221 = vmatmul.bf16.gmra.mxu0 %v1211
    %v1222 = vpop.f32.mrf.mxu0
    %v1223 = vadd.f32 0.0, %v1222
    %v1224 = vpop.f32.mrf.mxu0
    %1225 = vdwg.mxu0
    %1226 = vmatpush.bf16.msra.mxu0 %v357
    %1227 = vmatpush.bf16.msra.mxu0 %v353
    %1228 = vmatpush.bf16.msra.mxu0 %v349
    %1229 = vmatpush.bf16.msra.mxu0 %v345
    %1230 = vmatpush.bf16.msra.mxu0 %v341
    %1231 = vmatpush.bf16.msra.mxu0 %v337
    %1232 = vmatpush.bf16.msra.mxu0 %v333
    %1233 = vmatpush.bf16.msra.mxu0 %v329
    %1234 = vmatmul.bf16.gmra.mxu0 %v1211
    %v1235 = vpop.f32.mrf.mxu0
    %v1236 = vadd.f32 0.0, %v1235
    %v1237 = vpop.f32.mrf.mxu0
    %1238 = vdwg.mxu0
    %1239 = vmatpush.bf16.msra.mxu0 %v358
    %1240 = vmatpush.bf16.msra.mxu0 %v354
    %1241 = vmatpush.bf16.msra.mxu0 %v350
    %1242 = vmatpush.bf16.msra.mxu0 %v346
    %1243 = vmatpush.bf16.msra.mxu0 %v342
    %1244 = vmatpush.bf16.msra.mxu0 %v338
    %1245 = vmatpush.bf16.msra.mxu0 %v334
    %1246 = vmatpush.bf16.msra.mxu0 %v330
    %1247 = vmatmul.bf16.gmra.mxu0 %v1211
    %v1248 = vpop.f32.mrf.mxu0
    %v1249 = vadd.f32 0.0, %v1248
    %v1250 = vpop.f32.mrf.mxu0
    %1251 = vdwg.mxu0
    %1252 = vmatpush.bf16.msra.mxu0 %v359
    %1253 = vmatpush.bf16.msra.mxu0 %v355
    %1254 = vmatpush.bf16.msra.mxu0 %v351
    %1255 = vmatpush.bf16.msra.mxu0 %v347
    %1256 = vmatpush.bf16.msra.mxu0 %v343
    %1257 = vmatpush.bf16.msra.mxu0 %v339
    %1258 = vmatpush.bf16.msra.mxu0 %v335
    %1259 = vmatpush.bf16.msra.mxu0 %v331
    %1260 = vmatmul.bf16.gmra.mxu0 %v1211
    %v1261 = vpop.f32.mrf.mxu0
    %v1262 = vadd.f32 0.0, %v1261
    %v1263 = vpop.f32.mrf.mxu0
    %1264 = vdwg.mxu0
    %v1269 = vrot.slane %v1223, 2
    %v1270 = vrot.slane %v1236, 2
    %v1271 = vrot.slane %v1249, 2
    %v1272 = vrot.slane %v1262, 2
    %v1277 = vadd.f32 %v187, %v1269
    %v1278 = vadd.f32 %v200, %v1270
    %v1279 = vadd.f32 %v213, %v1271
    %v1280 = vadd.f32 %v226, %v1272
    %v1281 = vxor.u32 %v1277, 2147483648
    %v1282 = vxor.u32 %v1278, 2147483648
    %v1283 = vxor.u32 %v1279, 2147483648
    %v1284 = vmul.f32 %v1281, 1.442695
    %v1285 = vpow.pop %v1284
    %v1286 = vmul.f32 %v1282, 1.442695
    %v1287 = vpow.pop %v1286
    %v1288 = vmul.f32 %v1283, 1.442695
    %v1289 = vpow.pop %v1288
    %v1290 = vadd.f32 %v1285, 1.0
    %v1291 = vadd.f32 %v1287, 1.0
    %v1292 = vadd.f32 %v1289, 1.0
    %v1293 = vrcp.pop %v1290
    %v1294 = vmul.f32 %v1290, %v1293
    %v1295 = vsub.f32 1.0, %v1294
    %v1296 = vmul.f32 %v1293, %v1295
    %v1297 = vadd.f32 %v1293, %v1296
    %vm1298 = vweird.f32 %v1290
    %vm1299 = vweird.f32 %v1293
    %vm1300 = vmor %vm1298, %vm1299
    %v1301 = vsel %vm1300, %v1293, %v1297
    %v1302 = vand.u32 2147483647, %v1290
    %vm1303 = vcmp.eq.f32.partialorder %v1302, 8.507059e+37
    %v1304 = vand.u32 %v1290, 2147483648
    %v1305 = vor.u32 1.1754944e-38, %v1304
    %v1306 = vsel %vm1303, %v1305, %v1301
    %v1307 = vmul.f32 1.0, %v1306
    %v1308 = vrcp.pop %v1291
    %v1309 = vmul.f32 %v1291, %v1308
    %v1310 = vsub.f32 1.0, %v1309
    %v1311 = vmul.f32 %v1308, %v1310
    %v1312 = vadd.f32 %v1308, %v1311
    %vm1313 = vweird.f32 %v1291
    %vm1314 = vweird.f32 %v1308
    %vm1315 = vmor %vm1313, %vm1314
    %v1316 = vsel %vm1315, %v1308, %v1312
    %v1317 = vand.u32 2147483647, %v1291
    %vm1318 = vcmp.eq.f32.partialorder %v1317, 8.507059e+37
    %v1319 = vand.u32 %v1291, 2147483648
    %v1320 = vor.u32 1.1754944e-38, %v1319
    %v1321 = vsel %vm1318, %v1320, %v1316
    %v1322 = vmul.f32 1.0, %v1321
    %v1323 = vrcp.pop %v1292
    %v1324 = vmul.f32 %v1292, %v1323
    %v1325 = vsub.f32 1.0, %v1324
    %v1326 = vmul.f32 %v1323, %v1325
    %v1327 = vadd.f32 %v1323, %v1326
    %vm1328 = vweird.f32 %v1292
    %vm1329 = vweird.f32 %v1323
    %vm1330 = vmor %vm1328, %vm1329
    %v1331 = vsel %vm1330, %v1323, %v1327
    %v1332 = vand.u32 2147483647, %v1292
    %vm1333 = vcmp.eq.f32.partialorder %v1332, 8.507059e+37
    %v1334 = vand.u32 %v1292, 2147483648
    %v1335 = vor.u32 1.1754944e-38, %v1334
    %v1336 = vsel %vm1333, %v1335, %v1331
    %v1337 = vmul.f32 1.0, %v1336
    %v1338 = vtanh.pop %v1280
    %v1340 = vrot.slane %v1203, 7
    %v1342 = vmul.f32 %v1322, %v1340
    %v1343 = vmul.f32 %v1307, %v1338
    %v1344 = vadd.f32 %v1342, %v1343
    %v1345 = vtanh.pop %v1344
    %v1346 = vmul.f32 %v1337, %v1345
    %1347 = vst [vmem:[#allocation2] sm:$0x40] %v1346
    %v1348 = vpack.c.bf16 %v1346, %v1346
    %v1350 = vrot.slane %v1348, 3
    %1352 = vmatpush.bf16.msra.mxu0 %v356
    %1353 = vmatpush.bf16.msra.mxu0 %v352
    %1354 = vmatpush.bf16.msra.mxu0 %v348
    %1355 = vmatpush.bf16.msra.mxu0 %v344
    %1356 = vmatpush.bf16.msra.mxu0 %v340
    %1357 = vmatpush.bf16.msra.mxu0 %v336
    %1358 = vmatpush.bf16.msra.mxu0 %v332
    %1359 = vmatpush.bf16.msra.mxu0 %v328
    %1360 = vmatmul.bf16.gmra.mxu0 %v1350
    %v1361 = vpop.f32.mrf.mxu0
    %v1362 = vadd.f32 0.0, %v1361
    %v1363 = vpop.f32.mrf.mxu0
    %1364 = vdwg.mxu0
    %1365 = vmatpush.bf16.msra.mxu0 %v357
    %1366 = vmatpush.bf16.msra.mxu0 %v353
    %1367 = vmatpush.bf16.msra.mxu0 %v349
    %1368 = vmatpush.bf16.msra.mxu0 %v345
    %1369 = vmatpush.bf16.msra.mxu0 %v341
    %1370 = vmatpush.bf16.msra.mxu0 %v337
    %1371 = vmatpush.bf16.msra.mxu0 %v333
    %1372 = vmatpush.bf16.msra.mxu0 %v329
    %1373 = vmatmul.bf16.gmra.mxu0 %v1350
    %v1374 = vpop.f32.mrf.mxu0
    %v1375 = vadd.f32 0.0, %v1374
    %v1376 = vpop.f32.mrf.mxu0
    %1377 = vdwg.mxu0
    %1378 = vmatpush.bf16.msra.mxu0 %v358
    %1379 = vmatpush.bf16.msra.mxu0 %v354
    %1380 = vmatpush.bf16.msra.mxu0 %v350
    %1381 = vmatpush.bf16.msra.mxu0 %v346
    %1382 = vmatpush.bf16.msra.mxu0 %v342
    %1383 = vmatpush.bf16.msra.mxu0 %v338
    %1384 = vmatpush.bf16.msra.mxu0 %v334
    %1385 = vmatpush.bf16.msra.mxu0 %v330
    %1386 = vmatmul.bf16.gmra.mxu0 %v1350
    %v1387 = vpop.f32.mrf.mxu0
    %v1388 = vadd.f32 0.0, %v1387
    %v1389 = vpop.f32.mrf.mxu0
    %1390 = vdwg.mxu0
    %1391 = vmatpush.bf16.msra.mxu0 %v359
    %1392 = vmatpush.bf16.msra.mxu0 %v355
    %1393 = vmatpush.bf16.msra.mxu0 %v351
    %1394 = vmatpush.bf16.msra.mxu0 %v347
    %1395 = vmatpush.bf16.msra.mxu0 %v343
    %1396 = vmatpush.bf16.msra.mxu0 %v339
    %1397 = vmatpush.bf16.msra.mxu0 %v335
    %1398 = vmatpush.bf16.msra.mxu0 %v331
    %1399 = vmatmul.bf16.gmra.mxu0 %v1350
    %v1400 = vpop.f32.mrf.mxu0
    %v1401 = vadd.f32 0.0, %v1400
    %v1402 = vpop.f32.mrf.mxu0
    %1403 = vdwg.mxu0
    %v1408 = vrot.slane %v1362, 1
    %v1409 = vrot.slane %v1375, 1
    %v1410 = vrot.slane %v1388, 1
    %v1411 = vrot.slane %v1401, 1
    %v1416 = vadd.f32 %v187, %v1408
    %v1417 = vadd.f32 %v200, %v1409
    %v1418 = vadd.f32 %v213, %v1410
    %v1419 = vadd.f32 %v226, %v1411
    %v1420 = vxor.u32 %v1416, 2147483648
    %v1421 = vxor.u32 %v1417, 2147483648
    %v1422 = vxor.u32 %v1418, 2147483648
    %v1423 = vmul.f32 %v1420, 1.442695
    %v1424 = vpow.pop %v1423
    %v1425 = vmul.f32 %v1421, 1.442695
    %v1426 = vpow.pop %v1425
    %v1427 = vmul.f32 %v1422, 1.442695
    %v1428 = vpow.pop %v1427
    %v1429 = vadd.f32 %v1424, 1.0
    %v1430 = vadd.f32 %v1426, 1.0
    %v1431 = vadd.f32 %v1428, 1.0
    %v1432 = vrcp.pop %v1429
    %v1433 = vmul.f32 %v1429, %v1432
    %v1434 = vsub.f32 1.0, %v1433
    %v1435 = vmul.f32 %v1432, %v1434
    %v1436 = vadd.f32 %v1432, %v1435
    %vm1437 = vweird.f32 %v1429
    %vm1438 = vweird.f32 %v1432
    %vm1439 = vmor %vm1437, %vm1438
    %v1440 = vsel %vm1439, %v1432, %v1436
    %v1441 = vand.u32 2147483647, %v1429
    %vm1442 = vcmp.eq.f32.partialorder %v1441, 8.507059e+37
    %v1443 = vand.u32 %v1429, 2147483648
    %v1444 = vor.u32 1.1754944e-38, %v1443
    %v1445 = vsel %vm1442, %v1444, %v1440
    %v1446 = vmul.f32 1.0, %v1445
    %v1447 = vrcp.pop %v1430
    %v1448 = vmul.f32 %v1430, %v1447
    %v1449 = vsub.f32 1.0, %v1448
    %v1450 = vmul.f32 %v1447, %v1449
    %v1451 = vadd.f32 %v1447, %v1450
    %vm1452 = vweird.f32 %v1430
    %vm1453 = vweird.f32 %v1447
    %vm1454 = vmor %vm1452, %vm1453
    %v1455 = vsel %vm1454, %v1447, %v1451
    %v1456 = vand.u32 2147483647, %v1430
    %vm1457 = vcmp.eq.f32.partialorder %v1456, 8.507059e+37
    %v1458 = vand.u32 %v1430, 2147483648
    %v1459 = vor.u32 1.1754944e-38, %v1458
    %v1460 = vsel %vm1457, %v1459, %v1455
    %v1461 = vmul.f32 1.0, %v1460
    %v1462 = vrcp.pop %v1431
    %v1463 = vmul.f32 %v1431, %v1462
    %v1464 = vsub.f32 1.0, %v1463
    %v1465 = vmul.f32 %v1462, %v1464
    %v1466 = vadd.f32 %v1462, %v1465
    %vm1467 = vweird.f32 %v1431
    %vm1468 = vweird.f32 %v1462
    %vm1469 = vmor %vm1467, %vm1468
    %v1470 = vsel %vm1469, %v1462, %v1466
    %v1471 = vand.u32 2147483647, %v1431
    %vm1472 = vcmp.eq.f32.partialorder %v1471, 8.507059e+37
    %v1473 = vand.u32 %v1431, 2147483648
    %v1474 = vor.u32 1.1754944e-38, %v1473
    %v1475 = vsel %vm1472, %v1474, %v1470
    %v1476 = vmul.f32 1.0, %v1475
    %v1477 = vtanh.pop %v1419
    %v1479 = vrot.slane %v1344, 7
    %v1481 = vmul.f32 %v1461, %v1479
    %v1482 = vmul.f32 %v1446, %v1477
    %v1483 = vadd.f32 %v1481, %v1482
    %v1484 = vtanh.pop %v1483
    %v1485 = vmul.f32 %v1476, %v1484
    %1486 = vst [vmem:[#allocation2] sm:$0x80] %v1485
    %v1487 = vld [vmem:[#allocation2] sm:$0xff]
    %v1488 = vpack.c.bf16 %v1487, %v1487
    %v1489 = vld [vmem:[#allocation11] sm:$0xff]
    %v1490 = vld [vmem:[#allocation11 + $0x8] sm:$0xff]
    %v1491 = vld [vmem:[#allocation11 + $0x10] sm:$0xff]
    %v1492 = vld [vmem:[#allocation11 + $0x18] sm:$0xff]
    %v1493 = vld [vmem:[#allocation11 + $0x20] sm:$0xff]
    %v1494 = vld [vmem:[#allocation11 + $0x28] sm:$0xff]
    %v1495 = vld [vmem:[#allocation11 + $0x30] sm:$0xff]
    %v1496 = vld [vmem:[#allocation11 + $0x38] sm:$0xff]
    %v1497 = vld [vmem:[#allocation11 + $0x40] sm:$0xff]
    %v1498 = vld [vmem:[#allocation11 + $0x48] sm:$0xff]
    %v1499 = vld [vmem:[#allocation11 + $0x50] sm:$0xff]
    %v1500 = vld [vmem:[#allocation11 + $0x58] sm:$0xff]
    %v1501 = vld [vmem:[#allocation11 + $0x60] sm:$0xff]
    %v1502 = vld [vmem:[#allocation11 + $0x68] sm:$0xff]
    %v1503 = vld [vmem:[#allocation11 + $0x70] sm:$0xff]
    %v1504 = vld [vmem:[#allocation11 + $0x78] sm:$0xff]
    %v1505 = vld [vmem:[%s5] sm:$0x3]
    %v1507 = vperm.slane %v1505, 0
    %v1508 = vperm.slane %v1505, 1
    %v1527 = vunpack.c.l.b16 %v1489
    %v1528 = vunpack.c.h.b16 %v1489
    %v1529 = vunpack.c.l.b16 %v1490
    %v1530 = vunpack.c.h.b16 %v1490
    %v1531 = vunpack.c.l.b16 %v1491
    %v1532 = vunpack.c.h.b16 %v1491
    %v1533 = vunpack.c.l.b16 %v1492
    %v1534 = vunpack.c.h.b16 %v1492
    %v1535 = vunpack.c.l.b16 %v1493
    %v1536 = vunpack.c.h.b16 %v1493
    %v1537 = vunpack.c.l.b16 %v1494
    %v1538 = vunpack.c.h.b16 %v1494
    %v1539 = vunpack.c.l.b16 %v1495
    %v1540 = vunpack.c.h.b16 %v1495
    %v1541 = vunpack.c.l.b16 %v1496
    %v1542 = vunpack.c.h.b16 %v1496
    %v1543 = vunpack.c.l.b16 %v1497
    %v1544 = vunpack.c.h.b16 %v1497
    %v1545 = vunpack.c.l.b16 %v1498
    %v1546 = vunpack.c.h.b16 %v1498
    %v1547 = vunpack.c.l.b16 %v1499
    %v1548 = vunpack.c.h.b16 %v1499
    %v1549 = vunpack.c.l.b16 %v1500
    %v1550 = vunpack.c.h.b16 %v1500
    %v1551 = vunpack.c.l.b16 %v1501
    %v1552 = vunpack.c.h.b16 %v1501
    %v1553 = vunpack.c.l.b16 %v1502
    %v1554 = vunpack.c.h.b16 %v1502
    %v1555 = vunpack.c.l.b16 %v1503
    %v1556 = vunpack.c.h.b16 %v1503
    %v1557 = vunpack.c.l.b16 %v1504
    %v1558 = vunpack.c.h.b16 %v1504
    %v1559 = vpack.c.b16 %v1529, %v1527
    %v1560 = vpack.c.b16 %v1530, %v1528
    %v1561 = vpack.c.b16 %v1533, %v1531
    %v1562 = vpack.c.b16 %v1534, %v1532
    %v1563 = vpack.c.b16 %v1537, %v1535
    %v1564 = vpack.c.b16 %v1538, %v1536
    %v1565 = vpack.c.b16 %v1541, %v1539
    %v1566 = vpack.c.b16 %v1542, %v1540
    %v1567 = vpack.c.b16 %v1545, %v1543
    %v1568 = vpack.c.b16 %v1546, %v1544
    %v1569 = vpack.c.b16 %v1549, %v1547
    %v1570 = vpack.c.b16 %v1550, %v1548
    %v1571 = vpack.c.b16 %v1553, %v1551
    %v1572 = vpack.c.b16 %v1554, %v1552
    %v1573 = vpack.c.b16 %v1557, %v1555
    %v1574 = vpack.c.b16 %v1558, %v1556
    %1591 = vmatpush.bf16.msra.mxu0 %v1573
    %1592 = vmatpush.bf16.msra.mxu0 %v1571
    %1593 = vmatpush.bf16.msra.mxu0 %v1569
    %1594 = vmatpush.bf16.msra.mxu0 %v1567
    %1595 = vmatpush.bf16.msra.mxu0 %v1565
    %1596 = vmatpush.bf16.msra.mxu0 %v1563
    %1597 = vmatpush.bf16.msra.mxu0 %v1561
    %1598 = vmatpush.bf16.msra.mxu0 %v1559
    %1599 = vmatmul.bf16.gmra.mxu0 %v1488
    %v1600 = vpop.f32.mrf.mxu0
    %v1601 = vadd.f32 %v1507, %v1600
    %v1602 = vpop.f32.mrf.mxu0
    %1603 = vdwg.mxu0
    %1604 = vmatpush.bf16.msra.mxu0 %v1574
    %1605 = vmatpush.bf16.msra.mxu0 %v1572
    %1606 = vmatpush.bf16.msra.mxu0 %v1570
    %1607 = vmatpush.bf16.msra.mxu0 %v1568
    %1608 = vmatpush.bf16.msra.mxu0 %v1566
    %1609 = vmatpush.bf16.msra.mxu0 %v1564
    %1610 = vmatpush.bf16.msra.mxu0 %v1562
    %1611 = vmatpush.bf16.msra.mxu0 %v1560
    %1612 = vmatmul.bf16.gmra.mxu0 %v1488
    %v1613 = vpop.f32.mrf.mxu0
    %v1614 = vadd.f32 %v1508, %v1613
    %v1615 = vpop.f32.mrf.mxu0
    %1616 = vdwg.mxu0
    %v1617 = vmax.f32 %v1601, %v1614
    %1618 = vmax.xlane.f32.xlu0 %v1617
    %v1619 = vpop.xlane.xlu0 %1618
    %v1620 = vsub.f32 %v1601, %v1619
    %v1621 = vsub.f32 %v1614, %v1619
    %v1622 = vmul.f32 %v1620, 1.442695
    %v1623 = vpow.pop %v1622
    %v1624 = vmul.f32 %v1621, 1.442695
    %v1625 = vpow.pop %v1624
    %v1626 = vadd.f32 %v1623, %v1625
    %1627 = vadd.xlane.f32.xlu0 %v1626
    %v1628 = vpop.xlane.xlu0 %1627
    %v1629 = vlog2.pop %v1628
    %v1630 = vmul.f32 %v1629, 0.6931472
    %v1631 = vadd.f32 %v1619, %v1630
    %v1632 = vsub.f32 %v1601, %v1631
    %v1633 = vsub.f32 %v1614, %v1631
    %1634 = vst [vmem:[#allocation12] sm:$0xff] %v1632
    %1635 = vst [vmem:[#allocation12 + $0x8] sm:$0xff] %v1633
    // Predicated region
    $region54: #{tpu_custom_call.1} parent=1 // pred_check
      _
    $region55: #{tpu_custom_call.1} parent=1 // pred_check_branch
      %1637 = sbr.rel (0) target = $region57
    $region56: #{tpu_custom_call.1} parent=1 // pred_region
      %1639 = vsyncadd [#allocation5], 0
      %s1641 = sshll.u32 [#allocation12], 4
      %s1642 = int_to_ptr.vmem [resolvable:$true] %s1641
      %s1643 = sshll.u32 %s8, 4
      %s1644 = int_to_ptr.hbm [resolvable:$true] %s1643
      %1646 = dma.vmem_to_hbm [thread:$0]  %s1642, 256, %s1644, [#allocation5]
    $region57: #{tpu_custom_call.1} parent=1 // pred_fallthru
      _
    // Predicated region
    $region58: #{tpu_custom_call.1} parent=1 // pred_check
      _
    $region59: #{tpu_custom_call.1} parent=1 // pred_check_branch
      %1648 = sbr.rel (0) target = $region61
    $region60: #{tpu_custom_call.1} parent=1 // pred_region
      %1650 = dma.done [#allocation5], 256
    $region61: #{tpu_custom_call.1} parent=1 // pred_fallthru
      _
    %1651 = vsyncpa [#allocation4], 1
    %1652 = vsyncpa [#allocation7], 1
    %1653 = vsyncpa [#allocation10], 1
    %1654 = vsyncpa [#allocation5], 1

</llo_original>
